<compile_context>
chip_gen: v7x
topology: tpu7x:2x2x1
jax: 0.10.0
libtpu: 0.0.40
codegen_flags: <defaults>
</compile_context>

<pallas_src>
import jax
import jax.numpy as jnp
from jax.experimental import pallas as pl
from jax.experimental.pallas import tpu as pltpu


# ----------------------------- Pallas kernel --------------------------------
def _gru_recurrence_kernel(gx_ref,      # (H, 3*Hd, tn)  precomputed input-side gates
                           wh_t_ref,    # (3*Hd, Hd)     hidden->gates weight (transposed)
                           bhn_ref,     # (Hd, 1)        b_hn (kept inside r*(...))
                           wout_t_ref,  # (S, Hd)        output projection (transposed)
                           out_ref):    # (S, tn)
    H = gx_ref.shape[0]
    Hd = wh_t_ref.shape[1]
    tn = gx_ref.shape[2]

    def step(t, h):                      # h: (Hd, tn), N on the lane axis
        g = gx_ref[t]                    # (3*Hd, tn)  -- includes b_ir+b_hr, b_iz+b_hz, b_in
        hh = jnp.dot(wh_t_ref[...], h,
                     preferred_element_type=jnp.float32)   # (3*Hd, tn), one fused matmul
        r = jax.nn.sigmoid(g[:Hd] + hh[:Hd])
        z = jax.nn.sigmoid(g[Hd:2 * Hd] + hh[Hd:2 * Hd])
        n = jnp.tanh(g[2 * Hd:] + r * (hh[2 * Hd:] + bhn_ref[...]))
        return (1.0 - z) * n + z * h

    h0 = jnp.zeros((Hd, tn), jnp.float32)
    h_last = jax.lax.fori_loop(0, H, step, h0, unroll=True)

    # Lane-dense final store: (S, tn) with tn on the 128-lane axis.
    out_ref[...] = jnp.dot(wout_t_ref[...], h_last,
                           preferred_element_type=jnp.float32)


# ------------------------------- wrapper -------------------------------------
def temporal_view_forward(spatial, meteorology, context, params, *, tn=None):
    H = meteorology.shape[0]
    B, X, Y, S = spatial.shape
    M = meteorology.shape[-1]
    C = context.shape[-1]
    Hd = params["wh"].shape[0]
    G = 3 * Hd
    N = B * X * Y

    f32 = jnp.float32
    hp = jax.lax.Precision.HIGHEST

    spatial_f = spatial.reshape(N, S).astype(f32)
    met_f = meteorology.reshape(H, N, M).astype(f32)
    ctx_f = context.reshape(H, N, C).astype(f32)

    # Hoisted x-side projection as large GEMMs (no input_x materialization, the
    # time-invariant spatial term is computed once). Gate-major, N on lanes.
    gx = (jnp.einsum("ns,sg->gn", spatial_f, params["wx_s"], precision=hp)[None]
          + jnp.einsum("hnm,mg->hgn", met_f, params["wx_m"], precision=hp)
          + jnp.einsum("hnc,cg->hgn", ctx_f, params["wx_c"], precision=hp)
          + params["bx"].T[None])                       # (H, 3*Hd, N)

    wh_t = params["wh"].T                               # (3*Hd, Hd)
    bhn_col = params["bhn"].T                           # (Hd, 1)
    w_out_t = params["w_out"].T                         # (S, Hd)

    if tn is None:
        tn = N                                          # single N tile (v5e/v6e best)
    assert N % tn == 0 and (tn == N or tn % 128 == 0), (
        "N tile must divide N and be lane-aligned (multiple of 128)")

    grid = (N // tn,)

    def full(shape):
        return pl.BlockSpec(shape, lambda n: (0,) * len(shape))

    out = pl.pallas_call(
        _gru_recurrence_kernel,
        out_shape=jax.ShapeDtypeStruct((S, N), f32),
        grid_spec=pltpu.PrefetchScalarGridSpec(
            num_scalar_prefetch=0,
            grid=grid,
            in_specs=[
                pl.BlockSpec((H, G, tn), lambda n: (0, 0, n)),   # all time steps at once
                full((G, Hd)),
                full((Hd, 1)),
                full((S, Hd)),
            ],
            out_specs=pl.BlockSpec((S, tn), lambda n: (0, n)),
        ),
        compiler_params=pltpu.CompilerParams(
            dimension_semantics=("parallel",)),
    )(gx, wh_t, bhn_col, w_out_t)

    return out.T.reshape(B, X, Y, S)


# ---------------------------- pure-JAX reference -----------------------------
def reference_forward(spatial, meteorology, context, params):
    # Structured like the PyTorch module: replicate spatial, concat features,
    # run the GRU equations over time, project the final hidden state.
    H = meteorology.shape[0]
    B, X, Y, S = spatial.shape
    Hd = params["wh"].shape[0]
    hp = jax.lax.Precision.HIGHEST

    spatial_rep = jnp.broadcast_to(spatial[None], (H,) + spatial.shape)
    input_x = jnp.concatenate(
        [spatial_rep, meteorology, context], axis=-1).astype(jnp.float32)
    N = B * X * Y
    I = input_x.shape[-1]
    x = input_x.reshape(H, N, I)

    wx = jnp.concatenate([params["wx_s"], params["wx_m"], params["wx_c"]],
                         axis=0)                          # (I, 3*Hd)
    wh = params["wh"]                                     # (Hd, 3*Hd)
    bx = params["bx"]                                     # (1, 3*Hd)
    bhn = params["bhn"]                                   # (1, Hd)

    def step(h, x_t):
        gx = jnp.dot(x_t, wx, precision=hp) + bx          # (N, 3*Hd)
        gh = jnp.dot(h, wh, precision=hp)                 # (N, 3*Hd)
        r = jax.nn.sigmoid(gx[:, :Hd] + gh[:, :Hd])
        z = jax.nn.sigmoid(gx[:, Hd:2 * Hd] + gh[:, Hd:2 * Hd])
        n = jnp.tanh(gx[:, 2 * Hd:] + r * (gh[:, 2 * Hd:] + bhn))
        return (1.0 - z) * n + z * h, None

    h0 = jnp.zeros((N, Hd), jnp.float32)
    h_final, _ = jax.lax.scan(step, h0, x)
    out = jnp.dot(h_final, params["w_out"], precision=hp)
    return out.reshape(B, X, Y, S)


# ------------------------------- parameters ----------------------------------
def init_params(key, spatial_size, meteorology_size, context_size, hidden_size):
    ks = jax.random.split(key, 7)
    lim = 1.0 / (hidden_size ** 0.5)
    u = lambda k, shape: jax.random.uniform(k, shape, jnp.float32, -lim, lim)
    G = 3 * hidden_size
    return dict(
        # Input-side gate weights, fused over gates (columns ordered r | z | n)
        # and split per input source so spatial@Wx_s can be hoisted out of time.
        wx_s=u(ks[0], (spatial_size, G)),
        wx_m=u(ks[1], (meteorology_size, G)),
        wx_c=u(ks[2], (context_size, G)),
        wh=u(ks[3], (hidden_size, G)),            # hidden-side fused gate weights
        bx=u(ks[4], (1, G)),                      # [b_ir+b_hr, b_iz+b_hz, b_in]
        bhn=u(ks[5], (1, hidden_size)),           # b_hn (stays inside r*(...))
        w_out=jax.random.normal(ks[6], (hidden_size, spatial_size), jnp.float32),
    )


# ---------------------------------- main --------------------------------------
if __name__ == "__main__":
    H, B, X, Y = 6, 2, 8, 8          # hours, batch, spatial grid
    S, M, C = 4, 3, 2                # spatial / meteorology / context feature sizes
    HIDDEN = 32

    key = jax.random.PRNGKey(0)
    k_sp, k_met, k_ctx, k_par = jax.random.split(key, 4)

    spatial = jax.random.normal(k_sp, (B, X, Y, S), jnp.float32)
    meteorology = jax.random.normal(k_met, (H, B, X, Y, M), jnp.float32)
    context = jax.random.normal(k_ctx, (H, B, X, Y, C), jnp.float32)

    params = init_params(k_par, S, M, C, HIDDEN)

    out = jax.block_until_ready(
        temporal_view_forward(spatial, meteorology, context, params))
    ref = jax.block_until_ready(
        reference_forward(spatial, meteorology, context, params))

    assert out.shape == (B, X, Y, S), out.shape
    max_err = float(jnp.max(jnp.abs(out - ref)))
    assert max_err < 2e-3, max_err

    print("KERNEL_OK")
</pallas_src>

<mosaic_0001>
module attributes {stable_mosaic.version = 11 : i64} {
  func.func @_gru_recurrence_kernel(%arg0: i32, %arg1: memref<6x96x128xf32, #tpu.memory_space<vmem>>, %arg2: memref<96x32xf32, #tpu.memory_space<vmem>>, %arg3: memref<32x1xf32, #tpu.memory_space<vmem>>, %arg4: memref<4x32xf32, #tpu.memory_space<vmem>>, %arg5: memref<4x128xf32, #tpu.memory_space<vmem>>) attributes {dimension_semantics = [#tpu.dimension_semantics<parallel>], iteration_bounds = array<i64: 1>, scalar_prefetch = 0 : i64, scratch_operands = 0 : i64, tpu.core_type = #tpu.core_type<tc>, window_params = [{transform_indices = @transform_0, window_bounds = array<i64: 6, 96, 128>}, {pipeline_mode = #tpu.pipeline_mode<synchronous>, transform_indices = @transform_1, window_bounds = array<i64: 96, 32>}, {pipeline_mode = #tpu.pipeline_mode<synchronous>, transform_indices = @transform_2, window_bounds = array<i64: 32, 1>}, {pipeline_mode = #tpu.pipeline_mode<synchronous>, transform_indices = @transform_3, window_bounds = array<i64: 4, 32>}, {transform_indices = @transform_4, window_bounds = array<i64: 4, 128>}]} {
    %cst = arith.constant 0.000000e+00 : f32
    %0 = vector.broadcast %cst : f32 to vector<32x128xf32>
    %c0_i32 = arith.constant 0 : i32
    %1 = arith.index_cast %c0_i32 : i32 to index
    %c0 = arith.constant 0 : index
    %c0_0 = arith.constant 0 : index
    %2 = vector.load %arg1[%1, %c0, %c0_0] : memref<6x96x128xf32, #tpu.memory_space<vmem>>, vector<1x96x128xf32>
    %3 = vector.shape_cast %2 : vector<1x96x128xf32> to vector<96x128xf32>
    %c0_1 = arith.constant 0 : index
    %c0_2 = arith.constant 0 : index
    %4 = vector.load %arg2[%c0_1, %c0_2] : memref<96x32xf32, #tpu.memory_space<vmem>>, vector<96x32xf32>
    %cst_3 = arith.constant dense<0.000000e+00> : vector<96x128xf32>
    %5 = tpu.matmul %4, %0, %cst_3 {dimension_numbers = #tpu.dot_dimension_numbers<[1], [0], [0], [1], [0, 0, 1, 1], [], []>} : vector<96x32xf32>, vector<32x128xf32>, vector<96x128xf32> -> vector<96x128xf32>
    %6 = vector.extract_strided_slice %3 {offsets = [0, 0], sizes = [32, 128], strides = [1, 1]} : vector<96x128xf32> to vector<32x128xf32>
    %7 = vector.extract_strided_slice %5 {offsets = [0, 0], sizes = [32, 128], strides = [1, 1]} : vector<96x128xf32> to vector<32x128xf32>
    %8 = arith.addf %6, %7 : vector<32x128xf32>
    %9 = arith.negf %8 : vector<32x128xf32>
    %10 = math.exp %9 : vector<32x128xf32>
    %cst_4 = arith.constant 1.000000e+00 : f32
    %11 = vector.broadcast %cst_4 : f32 to vector<32x128xf32>
    %12 = arith.addf %11, %10 : vector<32x128xf32>
    %13 = arith.divf %11, %12 : vector<32x128xf32>
    %14 = vector.extract_strided_slice %3 {offsets = [32, 0], sizes = [32, 128], strides = [1, 1]} : vector<96x128xf32> to vector<32x128xf32>
    %15 = vector.extract_strided_slice %5 {offsets = [32, 0], sizes = [32, 128], strides = [1, 1]} : vector<96x128xf32> to vector<32x128xf32>
    %16 = arith.addf %14, %15 : vector<32x128xf32>
    %17 = arith.negf %16 : vector<32x128xf32>
    %18 = math.exp %17 : vector<32x128xf32>
    %cst_5 = arith.constant 1.000000e+00 : f32
    %19 = vector.broadcast %cst_5 : f32 to vector<32x128xf32>
    %20 = arith.addf %19, %18 : vector<32x128xf32>
    %21 = arith.divf %19, %20 : vector<32x128xf32>
    %22 = vector.extract_strided_slice %3 {offsets = [64, 0], sizes = [32, 128], strides = [1, 1]} : vector<96x128xf32> to vector<32x128xf32>
    %23 = vector.extract_strided_slice %5 {offsets = [64, 0], sizes = [32, 128], strides = [1, 1]} : vector<96x128xf32> to vector<32x128xf32>
    %c0_6 = arith.constant 0 : index
    %c0_7 = arith.constant 0 : index
    %24 = vector.load %arg3[%c0_6, %c0_7] : memref<32x1xf32, #tpu.memory_space<vmem>>, vector<32x1xf32>
    %25 = vector.broadcast %24 : vector<32x1xf32> to vector<32x128xf32>
    %26 = arith.addf %23, %25 : vector<32x128xf32>
    %27 = arith.mulf %13, %26 : vector<32x128xf32>
    %28 = arith.addf %22, %27 : vector<32x128xf32>
    %29 = math.tanh %28 : vector<32x128xf32>
    %cst_8 = arith.constant 1.000000e+00 : f32
    %30 = vector.broadcast %cst_8 : f32 to vector<32x128xf32>
    %31 = arith.subf %30, %21 : vector<32x128xf32>
    %32 = arith.mulf %31, %29 : vector<32x128xf32>
    %33 = arith.mulf %21, %0 : vector<32x128xf32>
    %34 = arith.addf %32, %33 : vector<32x128xf32>
    %c1_i32 = arith.constant 1 : i32
    %35 = arith.index_cast %c1_i32 : i32 to index
    %c0_9 = arith.constant 0 : index
    %c0_10 = arith.constant 0 : index
    %36 = vector.load %arg1[%35, %c0_9, %c0_10] : memref<6x96x128xf32, #tpu.memory_space<vmem>>, vector<1x96x128xf32>
    %37 = vector.shape_cast %36 : vector<1x96x128xf32> to vector<96x128xf32>
    %c0_11 = arith.constant 0 : index
    %c0_12 = arith.constant 0 : index
    %38 = vector.load %arg2[%c0_11, %c0_12] : memref<96x32xf32, #tpu.memory_space<vmem>>, vector<96x32xf32>
    %cst_13 = arith.constant dense<0.000000e+00> : vector<96x128xf32>
    %39 = tpu.matmul %38, %34, %cst_13 {dimension_numbers = #tpu.dot_dimension_numbers<[1], [0], [0], [1], [0, 0, 1, 1], [], []>} : vector<96x32xf32>, vector<32x128xf32>, vector<96x128xf32> -> vector<96x128xf32>
    %40 = vector.extract_strided_slice %37 {offsets = [0, 0], sizes = [32, 128], strides = [1, 1]} : vector<96x128xf32> to vector<32x128xf32>
    %41 = vector.extract_strided_slice %39 {offsets = [0, 0], sizes = [32, 128], strides = [1, 1]} : vector<96x128xf32> to vector<32x128xf32>
    %42 = arith.addf %40, %41 : vector<32x128xf32>
    %43 = arith.negf %42 : vector<32x128xf32>
    %44 = math.exp %43 : vector<32x128xf32>
    %cst_14 = arith.constant 1.000000e+00 : f32
    %45 = vector.broadcast %cst_14 : f32 to vector<32x128xf32>
    %46 = arith.addf %45, %44 : vector<32x128xf32>
    %47 = arith.divf %45, %46 : vector<32x128xf32>
    %48 = vector.extract_strided_slice %37 {offsets = [32, 0], sizes = [32, 128], strides = [1, 1]} : vector<96x128xf32> to vector<32x128xf32>
    %49 = vector.extract_strided_slice %39 {offsets = [32, 0], sizes = [32, 128], strides = [1, 1]} : vector<96x128xf32> to vector<32x128xf32>
    %50 = arith.addf %48, %49 : vector<32x128xf32>
    %51 = arith.negf %50 : vector<32x128xf32>
    %52 = math.exp %51 : vector<32x128xf32>
    %cst_15 = arith.constant 1.000000e+00 : f32
    %53 = vector.broadcast %cst_15 : f32 to vector<32x128xf32>
    %54 = arith.addf %53, %52 : vector<32x128xf32>
    %55 = arith.divf %53, %54 : vector<32x128xf32>
    %56 = vector.extract_strided_slice %37 {offsets = [64, 0], sizes = [32, 128], strides = [1, 1]} : vector<96x128xf32> to vector<32x128xf32>
    %57 = vector.extract_strided_slice %39 {offsets = [64, 0], sizes = [32, 128], strides = [1, 1]} : vector<96x128xf32> to vector<32x128xf32>
    %c0_16 = arith.constant 0 : index
    %c0_17 = arith.constant 0 : index
    %58 = vector.load %arg3[%c0_16, %c0_17] : memref<32x1xf32, #tpu.memory_space<vmem>>, vector<32x1xf32>
    %59 = vector.broadcast %58 : vector<32x1xf32> to vector<32x128xf32>
    %60 = arith.addf %57, %59 : vector<32x128xf32>
    %61 = arith.mulf %47, %60 : vector<32x128xf32>
    %62 = arith.addf %56, %61 : vector<32x128xf32>
    %63 = math.tanh %62 : vector<32x128xf32>
    %cst_18 = arith.constant 1.000000e+00 : f32
    %64 = vector.broadcast %cst_18 : f32 to vector<32x128xf32>
    %65 = arith.subf %64, %55 : vector<32x128xf32>
    %66 = arith.mulf %65, %63 : vector<32x128xf32>
    %67 = arith.mulf %55, %34 : vector<32x128xf32>
    %68 = arith.addf %66, %67 : vector<32x128xf32>
    %c2_i32 = arith.constant 2 : i32
    %69 = arith.index_cast %c2_i32 : i32 to index
    %c0_19 = arith.constant 0 : index
    %c0_20 = arith.constant 0 : index
    %70 = vector.load %arg1[%69, %c0_19, %c0_20] : memref<6x96x128xf32, #tpu.memory_space<vmem>>, vector<1x96x128xf32>
    %71 = vector.shape_cast %70 : vector<1x96x128xf32> to vector<96x128xf32>
    %c0_21 = arith.constant 0 : index
    %c0_22 = arith.constant 0 : index
    %72 = vector.load %arg2[%c0_21, %c0_22] : memref<96x32xf32, #tpu.memory_space<vmem>>, vector<96x32xf32>
    %cst_23 = arith.constant dense<0.000000e+00> : vector<96x128xf32>
    %73 = tpu.matmul %72, %68, %cst_23 {dimension_numbers = #tpu.dot_dimension_numbers<[1], [0], [0], [1], [0, 0, 1, 1], [], []>} : vector<96x32xf32>, vector<32x128xf32>, vector<96x128xf32> -> vector<96x128xf32>
    %74 = vector.extract_strided_slice %71 {offsets = [0, 0], sizes = [32, 128], strides = [1, 1]} : vector<96x128xf32> to vector<32x128xf32>
    %75 = vector.extract_strided_slice %73 {offsets = [0, 0], sizes = [32, 128], strides = [1, 1]} : vector<96x128xf32> to vector<32x128xf32>
    %76 = arith.addf %74, %75 : vector<32x128xf32>
    %77 = arith.negf %76 : vector<32x128xf32>
    %78 = math.exp %77 : vector<32x128xf32>
    %cst_24 = arith.constant 1.000000e+00 : f32
    %79 = vector.broadcast %cst_24 : f32 to vector<32x128xf32>
    %80 = arith.addf %79, %78 : vector<32x128xf32>
    %81 = arith.divf %79, %80 : vector<32x128xf32>
    %82 = vector.extract_strided_slice %71 {offsets = [32, 0], sizes = [32, 128], strides = [1, 1]} : vector<96x128xf32> to vector<32x128xf32>
    %83 = vector.extract_strided_slice %73 {offsets = [32, 0], sizes = [32, 128], strides = [1, 1]} : vector<96x128xf32> to vector<32x128xf32>
    %84 = arith.addf %82, %83 : vector<32x128xf32>
    %85 = arith.negf %84 : vector<32x128xf32>
    %86 = math.exp %85 : vector<32x128xf32>
    %cst_25 = arith.constant 1.000000e+00 : f32
    %87 = vector.broadcast %cst_25 : f32 to vector<32x128xf32>
    %88 = arith.addf %87, %86 : vector<32x128xf32>
    %89 = arith.divf %87, %88 : vector<32x128xf32>
    %90 = vector.extract_strided_slice %71 {offsets = [64, 0], sizes = [32, 128], strides = [1, 1]} : vector<96x128xf32> to vector<32x128xf32>
    %91 = vector.extract_strided_slice %73 {offsets = [64, 0], sizes = [32, 128], strides = [1, 1]} : vector<96x128xf32> to vector<32x128xf32>
    %c0_26 = arith.constant 0 : index
    %c0_27 = arith.constant 0 : index
    %92 = vector.load %arg3[%c0_26, %c0_27] : memref<32x1xf32, #tpu.memory_space<vmem>>, vector<32x1xf32>
    %93 = vector.broadcast %92 : vector<32x1xf32> to vector<32x128xf32>
    %94 = arith.addf %91, %93 : vector<32x128xf32>
    %95 = arith.mulf %81, %94 : vector<32x128xf32>
    %96 = arith.addf %90, %95 : vector<32x128xf32>
    %97 = math.tanh %96 : vector<32x128xf32>
    %cst_28 = arith.constant 1.000000e+00 : f32
    %98 = vector.broadcast %cst_28 : f32 to vector<32x128xf32>
    %99 = arith.subf %98, %89 : vector<32x128xf32>
    %100 = arith.mulf %99, %97 : vector<32x128xf32>
    %101 = arith.mulf %89, %68 : vector<32x128xf32>
    %102 = arith.addf %100, %101 : vector<32x128xf32>
    %c3_i32 = arith.constant 3 : i32
    %103 = arith.index_cast %c3_i32 : i32 to index
    %c0_29 = arith.constant 0 : index
    %c0_30 = arith.constant 0 : index
    %104 = vector.load %arg1[%103, %c0_29, %c0_30] : memref<6x96x128xf32, #tpu.memory_space<vmem>>, vector<1x96x128xf32>
    %105 = vector.shape_cast %104 : vector<1x96x128xf32> to vector<96x128xf32>
    %c0_31 = arith.constant 0 : index
    %c0_32 = arith.constant 0 : index
    %106 = vector.load %arg2[%c0_31, %c0_32] : memref<96x32xf32, #tpu.memory_space<vmem>>, vector<96x32xf32>
    %cst_33 = arith.constant dense<0.000000e+00> : vector<96x128xf32>
    %107 = tpu.matmul %106, %102, %cst_33 {dimension_numbers = #tpu.dot_dimension_numbers<[1], [0], [0], [1], [0, 0, 1, 1], [], []>} : vector<96x32xf32>, vector<32x128xf32>, vector<96x128xf32> -> vector<96x128xf32>
    %108 = vector.extract_strided_slice %105 {offsets = [0, 0], sizes = [32, 128], strides = [1, 1]} : vector<96x128xf32> to vector<32x128xf32>
    %109 = vector.extract_strided_slice %107 {offsets = [0, 0], sizes = [32, 128], strides = [1, 1]} : vector<96x128xf32> to vector<32x128xf32>
    %110 = arith.addf %108, %109 : vector<32x128xf32>
    %111 = arith.negf %110 : vector<32x128xf32>
    %112 = math.exp %111 : vector<32x128xf32>
    %cst_34 = arith.constant 1.000000e+00 : f32
    %113 = vector.broadcast %cst_34 : f32 to vector<32x128xf32>
    %114 = arith.addf %113, %112 : vector<32x128xf32>
    %115 = arith.divf %113, %114 : vector<32x128xf32>
    %116 = vector.extract_strided_slice %105 {offsets = [32, 0], sizes = [32, 128], strides = [1, 1]} : vector<96x128xf32> to vector<32x128xf32>
    %117 = vector.extract_strided_slice %107 {offsets = [32, 0], sizes = [32, 128], strides = [1, 1]} : vector<96x128xf32> to vector<32x128xf32>
    %118 = arith.addf %116, %117 : vector<32x128xf32>
    %119 = arith.negf %118 : vector<32x128xf32>
    %120 = math.exp %119 : vector<32x128xf32>
    %cst_35 = arith.constant 1.000000e+00 : f32
    %121 = vector.broadcast %cst_35 : f32 to vector<32x128xf32>
    %122 = arith.addf %121, %120 : vector<32x128xf32>
    %123 = arith.divf %121, %122 : vector<32x128xf32>
    %124 = vector.extract_strided_slice %105 {offsets = [64, 0], sizes = [32, 128], strides = [1, 1]} : vector<96x128xf32> to vector<32x128xf32>
    %125 = vector.extract_strided_slice %107 {offsets = [64, 0], sizes = [32, 128], strides = [1, 1]} : vector<96x128xf32> to vector<32x128xf32>
    %c0_36 = arith.constant 0 : index
    %c0_37 = arith.constant 0 : index
    %126 = vector.load %arg3[%c0_36, %c0_37] : memref<32x1xf32, #tpu.memory_space<vmem>>, vector<32x1xf32>
    %127 = vector.broadcast %126 : vector<32x1xf32> to vector<32x128xf32>
    %128 = arith.addf %125, %127 : vector<32x128xf32>
    %129 = arith.mulf %115, %128 : vector<32x128xf32>
    %130 = arith.addf %124, %129 : vector<32x128xf32>
    %131 = math.tanh %130 : vector<32x128xf32>
    %cst_38 = arith.constant 1.000000e+00 : f32
    %132 = vector.broadcast %cst_38 : f32 to vector<32x128xf32>
    %133 = arith.subf %132, %123 : vector<32x128xf32>
    %134 = arith.mulf %133, %131 : vector<32x128xf32>
    %135 = arith.mulf %123, %102 : vector<32x128xf32>
    %136 = arith.addf %134, %135 : vector<32x128xf32>
    %c4_i32 = arith.constant 4 : i32
    %137 = arith.index_cast %c4_i32 : i32 to index
    %c0_39 = arith.constant 0 : index
    %c0_40 = arith.constant 0 : index
    %138 = vector.load %arg1[%137, %c0_39, %c0_40] : memref<6x96x128xf32, #tpu.memory_space<vmem>>, vector<1x96x128xf32>
    %139 = vector.shape_cast %138 : vector<1x96x128xf32> to vector<96x128xf32>
    %c0_41 = arith.constant 0 : index
    %c0_42 = arith.constant 0 : index
    %140 = vector.load %arg2[%c0_41, %c0_42] : memref<96x32xf32, #tpu.memory_space<vmem>>, vector<96x32xf32>
    %cst_43 = arith.constant dense<0.000000e+00> : vector<96x128xf32>
    %141 = tpu.matmul %140, %136, %cst_43 {dimension_numbers = #tpu.dot_dimension_numbers<[1], [0], [0], [1], [0, 0, 1, 1], [], []>} : vector<96x32xf32>, vector<32x128xf32>, vector<96x128xf32> -> vector<96x128xf32>
    %142 = vector.extract_strided_slice %139 {offsets = [0, 0], sizes = [32, 128], strides = [1, 1]} : vector<96x128xf32> to vector<32x128xf32>
    %143 = vector.extract_strided_slice %141 {offsets = [0, 0], sizes = [32, 128], strides = [1, 1]} : vector<96x128xf32> to vector<32x128xf32>
    %144 = arith.addf %142, %143 : vector<32x128xf32>
    %145 = arith.negf %144 : vector<32x128xf32>
    %146 = math.exp %145 : vector<32x128xf32>
    %cst_44 = arith.constant 1.000000e+00 : f32
    %147 = vector.broadcast %cst_44 : f32 to vector<32x128xf32>
    %148 = arith.addf %147, %146 : vector<32x128xf32>
    %149 = arith.divf %147, %148 : vector<32x128xf32>
    %150 = vector.extract_strided_slice %139 {offsets = [32, 0], sizes = [32, 128], strides = [1, 1]} : vector<96x128xf32> to vector<32x128xf32>
    %151 = vector.extract_strided_slice %141 {offsets = [32, 0], sizes = [32, 128], strides = [1, 1]} : vector<96x128xf32> to vector<32x128xf32>
    %152 = arith.addf %150, %151 : vector<32x128xf32>
    %153 = arith.negf %152 : vector<32x128xf32>
    %154 = math.exp %153 : vector<32x128xf32>
    %cst_45 = arith.constant 1.000000e+00 : f32
    %155 = vector.broadcast %cst_45 : f32 to vector<32x128xf32>
    %156 = arith.addf %155, %154 : vector<32x128xf32>
    %157 = arith.divf %155, %156 : vector<32x128xf32>
    %158 = vector.extract_strided_slice %139 {offsets = [64, 0], sizes = [32, 128], strides = [1, 1]} : vector<96x128xf32> to vector<32x128xf32>
    %159 = vector.extract_strided_slice %141 {offsets = [64, 0], sizes = [32, 128], strides = [1, 1]} : vector<96x128xf32> to vector<32x128xf32>
    %c0_46 = arith.constant 0 : index
    %c0_47 = arith.constant 0 : index
    %160 = vector.load %arg3[%c0_46, %c0_47] : memref<32x1xf32, #tpu.memory_space<vmem>>, vector<32x1xf32>
    %161 = vector.broadcast %160 : vector<32x1xf32> to vector<32x128xf32>
    %162 = arith.addf %159, %161 : vector<32x128xf32>
    %163 = arith.mulf %149, %162 : vector<32x128xf32>
    %164 = arith.addf %158, %163 : vector<32x128xf32>
    %165 = math.tanh %164 : vector<32x128xf32>
    %cst_48 = arith.constant 1.000000e+00 : f32
    %166 = vector.broadcast %cst_48 : f32 to vector<32x128xf32>
    %167 = arith.subf %166, %157 : vector<32x128xf32>
    %168 = arith.mulf %167, %165 : vector<32x128xf32>
    %169 = arith.mulf %157, %136 : vector<32x128xf32>
    %170 = arith.addf %168, %169 : vector<32x128xf32>
    %c5_i32 = arith.constant 5 : i32
    %171 = arith.index_cast %c5_i32 : i32 to index
    %c0_49 = arith.constant 0 : index
    %c0_50 = arith.constant 0 : index
    %172 = vector.load %arg1[%171, %c0_49, %c0_50] : memref<6x96x128xf32, #tpu.memory_space<vmem>>, vector<1x96x128xf32>
    %173 = vector.shape_cast %172 : vector<1x96x128xf32> to vector<96x128xf32>
    %c0_51 = arith.constant 0 : index
    %c0_52 = arith.constant 0 : index
    %174 = vector.load %arg2[%c0_51, %c0_52] : memref<96x32xf32, #tpu.memory_space<vmem>>, vector<96x32xf32>
    %cst_53 = arith.constant dense<0.000000e+00> : vector<96x128xf32>
    %175 = tpu.matmul %174, %170, %cst_53 {dimension_numbers = #tpu.dot_dimension_numbers<[1], [0], [0], [1], [0, 0, 1, 1], [], []>} : vector<96x32xf32>, vector<32x128xf32>, vector<96x128xf32> -> vector<96x128xf32>
    %176 = vector.extract_strided_slice %173 {offsets = [0, 0], sizes = [32, 128], strides = [1, 1]} : vector<96x128xf32> to vector<32x128xf32>
    %177 = vector.extract_strided_slice %175 {offsets = [0, 0], sizes = [32, 128], strides = [1, 1]} : vector<96x128xf32> to vector<32x128xf32>
    %178 = arith.addf %176, %177 : vector<32x128xf32>
    %179 = arith.negf %178 : vector<32x128xf32>
    %180 = math.exp %179 : vector<32x128xf32>
    %cst_54 = arith.constant 1.000000e+00 : f32
    %181 = vector.broadcast %cst_54 : f32 to vector<32x128xf32>
    %182 = arith.addf %181, %180 : vector<32x128xf32>
    %183 = arith.divf %181, %182 : vector<32x128xf32>
    %184 = vector.extract_strided_slice %173 {offsets = [32, 0], sizes = [32, 128], strides = [1, 1]} : vector<96x128xf32> to vector<32x128xf32>
    %185 = vector.extract_strided_slice %175 {offsets = [32, 0], sizes = [32, 128], strides = [1, 1]} : vector<96x128xf32> to vector<32x128xf32>
    %186 = arith.addf %184, %185 : vector<32x128xf32>
    %187 = arith.negf %186 : vector<32x128xf32>
    %188 = math.exp %187 : vector<32x128xf32>
    %cst_55 = arith.constant 1.000000e+00 : f32
    %189 = vector.broadcast %cst_55 : f32 to vector<32x128xf32>
    %190 = arith.addf %189, %188 : vector<32x128xf32>
    %191 = arith.divf %189, %190 : vector<32x128xf32>
    %192 = vector.extract_strided_slice %173 {offsets = [64, 0], sizes = [32, 128], strides = [1, 1]} : vector<96x128xf32> to vector<32x128xf32>
    %193 = vector.extract_strided_slice %175 {offsets = [64, 0], sizes = [32, 128], strides = [1, 1]} : vector<96x128xf32> to vector<32x128xf32>
    %c0_56 = arith.constant 0 : index
    %c0_57 = arith.constant 0 : index
    %194 = vector.load %arg3[%c0_56, %c0_57] : memref<32x1xf32, #tpu.memory_space<vmem>>, vector<32x1xf32>
    %195 = vector.broadcast %194 : vector<32x1xf32> to vector<32x128xf32>
    %196 = arith.addf %193, %195 : vector<32x128xf32>
    %197 = arith.mulf %183, %196 : vector<32x128xf32>
    %198 = arith.addf %192, %197 : vector<32x128xf32>
    %199 = math.tanh %198 : vector<32x128xf32>
    %cst_58 = arith.constant 1.000000e+00 : f32
    %200 = vector.broadcast %cst_58 : f32 to vector<32x128xf32>
    %201 = arith.subf %200, %191 : vector<32x128xf32>
    %202 = arith.mulf %201, %199 : vector<32x128xf32>
    %203 = arith.mulf %191, %170 : vector<32x128xf32>
    %204 = arith.addf %202, %203 : vector<32x128xf32>
    %c6_i32 = arith.constant 6 : i32
    %c0_59 = arith.constant 0 : index
    %c0_60 = arith.constant 0 : index
    %205 = vector.load %arg4[%c0_59, %c0_60] : memref<4x32xf32, #tpu.memory_space<vmem>>, vector<4x32xf32>
    %cst_61 = arith.constant dense<0.000000e+00> : vector<4x128xf32>
    %206 = tpu.matmul %205, %204, %cst_61 {dimension_numbers = #tpu.dot_dimension_numbers<[1], [0], [0], [1], [0, 0, 1, 1], [], []>} : vector<4x32xf32>, vector<32x128xf32>, vector<4x128xf32> -> vector<4x128xf32>
    %c0_62 = arith.constant 0 : index
    %c0_63 = arith.constant 0 : index
    %207 = vector.load %arg5[%c0_62, %c0_63] : memref<4x128xf32, #tpu.memory_space<vmem>>, vector<4x128xf32>
    tpu.vector_store %arg5[%c0_62, %c0_63], %206 {strides = array<i32>} : memref<4x128xf32, #tpu.memory_space<vmem>>, vector<4x128xf32>,
    return
  }
  func.func @transform_0(%arg0: i32) -> (i32, i32, i32) {
    %c0_i32 = arith.constant 0 : i32
    %c0_i32_0 = arith.constant 0 : i32
    %c0_i32_1 = arith.constant 0 : i32
    return %c0_i32, %c0_i32_0, %arg0 : i32, i32, i32
  }
  func.func @transform_1(%arg0: i32) -> (i32, i32) {
    %c0_i32 = arith.constant 0 : i32
    %c0_i32_0 = arith.constant 0 : i32
    %c0_i32_1 = arith.constant 0 : i32
    return %c0_i32, %c0_i32_0 : i32, i32
  }
  func.func @transform_2(%arg0: i32) -> (i32, i32) {
    %c0_i32 = arith.constant 0 : i32
    %c0_i32_0 = arith.constant 0 : i32
    %c0_i32_1 = arith.constant 0 : i32
    return %c0_i32, %c0_i32_0 : i32, i32
  }
  func.func @transform_3(%arg0: i32) -> (i32, i32) {
    %c0_i32 = arith.constant 0 : i32
    %c0_i32_0 = arith.constant 0 : i32
    %c0_i32_1 = arith.constant 0 : i32
    return %c0_i32, %c0_i32_0 : i32, i32
  }
  func.func @transform_4(%arg0: i32) -> (i32, i32) {
    %c0_i32 = arith.constant 0 : i32
    %c0_i32_0 = arith.constant 0 : i32
    return %c0_i32, %arg0 : i32, i32
  }
}

</mosaic_0001>

<llo_original>
// kernel: tpu_custom_call.1
$region0: #{tpu_custom_call.1}
  #allocation0 [shape = 'u32[]', space=smem, size = 0x4, offset = 0x4, fixed_abs, tag = 'smem constant byte address 0x4 - core index']
  #allocation1 [shape = 'u32[144,128]{1,0:T(1,128)}', space=vmem, size = 0x12000, scoped, tag = 'internal scratch']
  %s0 = inlined_call_operand.hbm [shape: f32[6,96,128], index: 0, kind: input, shape index: {}]
  %s1 = inlined_call_operand.vmem [shape: f32[96,32], index: 1, kind: input, shape index: {}]
  %s2 = inlined_call_operand.vmem [shape: f32[32,1], index: 2, kind: input, shape index: {}]
  %s3 = inlined_call_operand.vmem [shape: f32[4,32], index: 3, kind: input, shape index: {}]
  %s4 = inlined_call_operand.hbm [shape: f32[4,128], index: 4, kind: output, shape index: {}]
  %s5 = sld [smem:[#allocation0]]
  $region30: #{tpu_custom_call.1} parent=0
    _
  %s7 = ssub.s32 1, %s5
  %s8 = scalar_select 0, %s7, %s5
  $region1: #{tpu_custom_call.1} parent=0
    #allocation2 [shape = 'u8[294912]{0}', space=vmem, size = 0x48000, scoped, tag = 'input window, operand 0, single buffered']
    #allocation3 [shape = 's32[1]{0}', space=sflag, size = 0x4, scoped, tag = 'scoped memory for tpu_custom_call.1']
    #allocation4 [shape = 's32[1]{0}', space=sflag, size = 0x4, scoped, tag = 'scoped memory for tpu_custom_call.1']
    #allocation5 [shape = 'u8[2048]{0}', space=vmem, size = 0x800, scoped, tag = 'output window, operand 0, single buffered']
    %9 = vsyncpa [#allocation3], 0
    %10 = vsyncpa [#allocation4], 0
    // Predicated region
    $region2: #{tpu_custom_call.1} parent=1 // pred_check
      _
    $region3: #{tpu_custom_call.1} parent=1 // pred_check_branch
      %12 = sbr.rel (0) target = $region5
    $region4: #{tpu_custom_call.1} parent=1 // pred_region
      %s14 = ssub.s32 9216, 9216
      %15 = vsyncadd [#allocation3], %s14
      %s16 = sshll.u32 [#allocation2], 4
      %s17 = int_to_ptr.vmem [resolvable:$true] %s16
      %22 = dma.hbm_to_vmem [thread:$0]  %s0, 9216, %s17, [#allocation3], 128, 128, 8
    $region5: #{tpu_custom_call.1} parent=1 // pred_fallthru
      _
    // Predicated region
    $region6: #{tpu_custom_call.1} parent=1 // pred_check
      _
    $region7: #{tpu_custom_call.1} parent=1 // pred_check_branch
      %24 = sbr.rel (0) target = $region9
    $region8: #{tpu_custom_call.1} parent=1 // pred_region
      _
    $region9: #{tpu_custom_call.1} parent=1 // pred_fallthru
      _
    // Predicated region
    $region10: #{tpu_custom_call.1} parent=1 // pred_check
      _
    $region11: #{tpu_custom_call.1} parent=1 // pred_check_branch
      %26 = sbr.rel (0) target = $region13
    $region12: #{tpu_custom_call.1} parent=1 // pred_region
      _
    $region13: #{tpu_custom_call.1} parent=1 // pred_fallthru
      _
    // Predicated region
    $region14: #{tpu_custom_call.1} parent=1 // pred_check
      _
    $region15: #{tpu_custom_call.1} parent=1 // pred_check_branch
      %28 = sbr.rel (0) target = $region17
    $region16: #{tpu_custom_call.1} parent=1 // pred_region
      _
    $region17: #{tpu_custom_call.1} parent=1 // pred_fallthru
      _
    // Predicated region
    $region18: #{tpu_custom_call.1} parent=1 // pred_check
      _
    $region19: #{tpu_custom_call.1} parent=1 // pred_check_branch
      %30 = sbr.rel (0) target = $region21
    $region20: #{tpu_custom_call.1} parent=1 // pred_region
      %31 = dma.done [#allocation3], 9216
    $region21: #{tpu_custom_call.1} parent=1 // pred_fallthru
      _
    %v32 = vld [vmem:[#allocation2] sm:$0xff]
    %v33 = vld [vmem:[#allocation2 + $0x8] sm:$0xff]
    %v34 = vld [vmem:[#allocation2 + $0x10] sm:$0xff]
    %v35 = vld [vmem:[#allocation2 + $0x18] sm:$0xff]
    %v36 = vld [vmem:[#allocation2 + $0x20] sm:$0xff]
    %v37 = vld [vmem:[#allocation2 + $0x28] sm:$0xff]
    %v38 = vld [vmem:[#allocation2 + $0x30] sm:$0xff]
    %v39 = vld [vmem:[#allocation2 + $0x38] sm:$0xff]
    %v40 = vld [vmem:[#allocation2 + $0x40] sm:$0xff]
    %v41 = vld [vmem:[#allocation2 + $0x48] sm:$0xff]
    %v42 = vld [vmem:[#allocation2 + $0x50] sm:$0xff]
    %v43 = vld [vmem:[#allocation2 + $0x58] sm:$0xff]
    %v44 = vld [vmem:[%s1] sm:$0xff]
    %v45 = vld [vmem:[%s1 + $0x8] sm:$0xff]
    %v46 = vld [vmem:[%s1 + $0x10] sm:$0xff]
    %v47 = vld [vmem:[%s1 + $0x18] sm:$0xff]
    %v48 = vld [vmem:[%s1 + $0x20] sm:$0xff]
    %v49 = vld [vmem:[%s1 + $0x28] sm:$0xff]
    %v50 = vld [vmem:[%s1 + $0x30] sm:$0xff]
    %v51 = vld [vmem:[%s1 + $0x38] sm:$0xff]
    %v52 = vld [vmem:[%s1 + $0x40] sm:$0xff]
    %v53 = vld [vmem:[%s1 + $0x48] sm:$0xff]
    %v54 = vld [vmem:[%s1 + $0x50] sm:$0xff]
    %v55 = vld [vmem:[%s1 + $0x58] sm:$0xff]
    %vm56 = vcmask 261120
    %v58 = vsel %vm56, %v44, 0
    %v61 = vsel %vm56, %v45, 0
    %v64 = vsel %vm56, %v46, 0
    %v67 = vsel %vm56, %v47, 0
    %v70 = vsel %vm56, %v48, 0
    %v73 = vsel %vm56, %v49, 0
    %v76 = vsel %vm56, %v50, 0
    %v79 = vsel %vm56, %v51, 0
    %v82 = vsel %vm56, %v52, 0
    %v85 = vsel %vm56, %v53, 0
    %v88 = vsel %vm56, %v54, 0
    %v91 = vsel %vm56, %v55, 0
    %93 = vmatprep.subr.mxu0 0.0
    %94 = vmatpush1.msra.mxu0 0.0
    %95 = vmatprep.subr.mxu0 0.0
    %96 = vmatpush1.msra.mxu0 0.0
    %97 = vmatprep.subr.mxu0 0.0
    %98 = vmatpush1.msra.mxu0 0.0
    %99 = vmatprep.subr.mxu0 0.0
    %100 = vmatpush1.msra.mxu0 0.0
    %101 = vmatprep.subr.mxu0 0.0
    %102 = vmatpush1.msra.mxu0 0.0
    %103 = vmatprep.subr.mxu0 0.0
    %104 = vmatpush1.msra.mxu0 0.0
    %105 = vmatprep.subr.mxu0 0.0
    %106 = vmatpush1.msra.mxu0 0.0
    %107 = vmatprep.subr.mxu0 0.0
    %108 = vmatpush1.msra.mxu0 0.0
    %109 = vmatprep.subr.mxu0 0.0
    %110 = vmatpush1.msra.mxu0 0.0
    %111 = vmatprep.subr.mxu0 0.0
    %112 = vmatpush1.msra.mxu0 0.0
    %113 = vmatprep.subr.mxu0 0.0
    %114 = vmatpush1.msra.mxu0 0.0
    %115 = vmatprep.subr.mxu0 0.0
    %116 = vmatpush1.msra.mxu0 0.0
    %117 = vmatprep.subr.mxu0 0.0
    %118 = vmatpush1.msra.mxu0 0.0
    %119 = vmatprep.subr.mxu0 0.0
    %120 = vmatpush1.msra.mxu0 0.0
    %121 = vmatprep.subr.mxu0 0.0
    %122 = vmatpush1.msra.mxu0 0.0
    %123 = vmatprep.subr.mxu0 0.0
    %124 = vmatpush1.msra.mxu0 0.0
    %125 = vmatprep.subr.mxu0 0.0
    %126 = vmatpush1.msra.mxu0 0.0
    %127 = vmatprep.subr.mxu0 0.0
    %128 = vmatpush1.msra.mxu0 0.0
    %129 = vmatprep.subr.mxu0 0.0
    %130 = vmatpush1.msra.mxu0 0.0
    %131 = vmatprep.subr.mxu0 0.0
    %132 = vmatpush1.msra.mxu0 0.0
    %133 = vmatprep.subr.mxu0 0.0
    %134 = vmatpush1.msra.mxu0 0.0
    %135 = vmatprep.subr.mxu0 0.0
    %136 = vmatpush1.msra.mxu0 0.0
    %137 = vmatprep.subr.mxu0 0.0
    %138 = vmatpush1.msra.mxu0 0.0
    %139 = vmatprep.subr.mxu0 0.0
    %140 = vmatpush1.msra.mxu0 0.0
    %141 = vmatprep.subr.mxu0 0.0
    %142 = vmatpush1.msra.mxu0 0.0
    %143 = vmatprep.subr.mxu0 0.0
    %144 = vmatpush1.msra.mxu0 0.0
    %145 = vmatprep.subr.mxu0 0.0
    %146 = vmatpush1.msra.mxu0 0.0
    %147 = vmatprep.subr.mxu0 0.0
    %148 = vmatpush1.msra.mxu0 0.0
    %149 = vmatprep.subr.mxu0 0.0
    %150 = vmatpush1.msra.mxu0 0.0
    %151 = vmatprep.subr.mxu0 0.0
    %152 = vmatpush1.msra.mxu0 0.0
    %153 = vmatprep.subr.mxu0 0.0
    %154 = vmatpush1.msra.mxu0 0.0
    %155 = vmatprep.subr.mxu0 0.0
    %156 = vmatpush1.msra.mxu0 0.0
    %157 = vmatprep.mubr.f32.mxu0 0.0
    %158 = vmatmul.mubr.f32.gmra.mrb[0].mxu0 %v58
    %v159 = vpop.f32.mrb[0].mxu0
    %v160 = vadd.f32 0.0, %v159
    %v161 = vpop.f32.mrb[0].mxu0
    %162 = vmatprep.mubr.f32.mxu0 0.0
    %163 = vmatmul.mubr.f32.gmra.mrb[0].mxu0 %v61
    %v164 = vpop.f32.mrb[0].mxu0
    %v165 = vadd.f32 0.0, %v164
    %v166 = vpop.f32.mrb[0].mxu0
    %167 = vmatprep.mubr.f32.mxu0 0.0
    %168 = vmatmul.mubr.f32.gmra.mrb[0].mxu0 %v64
    %v169 = vpop.f32.mrb[0].mxu0
    %v170 = vadd.f32 0.0, %v169
    %v171 = vpop.f32.mrb[0].mxu0
    %172 = vmatprep.mubr.f32.mxu0 0.0
    %173 = vmatmul.mubr.f32.gmra.mrb[0].mxu0 %v67
    %v174 = vpop.f32.mrb[0].mxu0
    %v175 = vadd.f32 0.0, %v174
    %v176 = vpop.f32.mrb[0].mxu0
    %177 = vmatprep.mubr.f32.mxu0 0.0
    %178 = vmatmul.mubr.f32.gmra.mrb[0].mxu0 %v70
    %v179 = vpop.f32.mrb[0].mxu0
    %v180 = vadd.f32 0.0, %v179
    %v181 = vpop.f32.mrb[0].mxu0
    %182 = vmatprep.mubr.f32.mxu0 0.0
    %183 = vmatmul.mubr.f32.gmra.mrb[0].mxu0 %v73
    %v184 = vpop.f32.mrb[0].mxu0
    %v185 = vadd.f32 0.0, %v184
    %v186 = vpop.f32.mrb[0].mxu0
    %187 = vmatprep.mubr.f32.mxu0 0.0
    %188 = vmatmul.mubr.f32.gmra.mrb[0].mxu0 %v76
    %v189 = vpop.f32.mrb[0].mxu0
    %v190 = vadd.f32 0.0, %v189
    %v191 = vpop.f32.mrb[0].mxu0
    %192 = vmatprep.mubr.f32.mxu0 0.0
    %193 = vmatmul.mubr.f32.gmra.mrb[0].mxu0 %v79
    %v194 = vpop.f32.mrb[0].mxu0
    %v195 = vadd.f32 0.0, %v194
    %v196 = vpop.f32.mrb[0].mxu0
    %197 = vmatprep.mubr.f32.mxu0 0.0
    %198 = vmatmul.mubr.f32.gmra.mrb[0].mxu0 %v82
    %v199 = vpop.f32.mrb[0].mxu0
    %v200 = vadd.f32 0.0, %v199
    %v201 = vpop.f32.mrb[0].mxu0
    %202 = vmatprep.mubr.f32.mxu0 0.0
    %203 = vmatmul.mubr.f32.gmra.mrb[0].mxu0 %v85
    %v204 = vpop.f32.mrb[0].mxu0
    %v205 = vadd.f32 0.0, %v204
    %v206 = vpop.f32.mrb[0].mxu0
    %207 = vmatprep.mubr.f32.mxu0 0.0
    %208 = vmatmul.mubr.f32.gmra.mrb[0].mxu0 %v88
    %v209 = vpop.f32.mrb[0].mxu0
    %v210 = vadd.f32 0.0, %v209
    %v211 = vpop.f32.mrb[0].mxu0
    %212 = vmatprep.mubr.f32.mxu0 0.0
    %213 = vmatmul.mubr.f32.gmra.mrb[0].mxu0 %v91
    %v214 = vpop.f32.mrb[0].mxu0
    %v215 = vadd.f32 0.0, %v214
    %v216 = vpop.f32.mrb[0].mxu0
    %217 = vdwg.mxu0
    %v218 = vadd.f32 %v32, %v160
    %v219 = vadd.f32 %v33, %v165
    %v220 = vadd.f32 %v34, %v170
    %v221 = vadd.f32 %v35, %v175
    %v222 = vxor.u32 %v218, 2147483648
    %v223 = vxor.u32 %v219, 2147483648
    %v224 = vxor.u32 %v220, 2147483648
    %v225 = vxor.u32 %v221, 2147483648
    %v226 = vmul.f32 %v222, 1.442695
    %v227 = vpow.pop %v226
    %v228 = vmul.f32 %v223, 1.442695
    %v229 = vpow.pop %v228
    %v230 = vmul.f32 %v224, 1.442695
    %v231 = vpow.pop %v230
    %v232 = vmul.f32 %v225, 1.442695
    %v233 = vpow.pop %v232
    %v234 = vadd.f32 %v227, 1.0
    %v235 = vadd.f32 %v229, 1.0
    %v236 = vadd.f32 %v231, 1.0
    %v237 = vadd.f32 %v233, 1.0
    %v238 = vrcp.pop %v234
    %v239 = vmul.f32 1.0, %v238
    %v240 = vrcp.pop %v235
    %v241 = vmul.f32 1.0, %v240
    %v242 = vrcp.pop %v236
    %v243 = vmul.f32 1.0, %v242
    %v244 = vrcp.pop %v237
    %v245 = vmul.f32 1.0, %v244
    %v246 = vadd.f32 %v36, %v180
    %v247 = vadd.f32 %v37, %v185
    %v248 = vadd.f32 %v38, %v190
    %v249 = vadd.f32 %v39, %v195
    %v250 = vxor.u32 %v246, 2147483648
    %v251 = vxor.u32 %v247, 2147483648
    %v252 = vxor.u32 %v248, 2147483648
    %v253 = vxor.u32 %v249, 2147483648
    %v254 = vmul.f32 %v250, 1.442695
    %v255 = vpow.pop %v254
    %v256 = vmul.f32 %v251, 1.442695
    %v257 = vpow.pop %v256
    %v258 = vmul.f32 %v252, 1.442695
    %v259 = vpow.pop %v258
    %v260 = vmul.f32 %v253, 1.442695
    %v261 = vpow.pop %v260
    %v262 = vadd.f32 %v255, 1.0
    %v263 = vadd.f32 %v257, 1.0
    %v264 = vadd.f32 %v259, 1.0
    %v265 = vadd.f32 %v261, 1.0
    %v266 = vrcp.pop %v262
    %v267 = vmul.f32 1.0, %v266
    %v268 = vrcp.pop %v263
    %v269 = vmul.f32 1.0, %v268
    %v270 = vrcp.pop %v264
    %v271 = vmul.f32 1.0, %v270
    %v272 = vrcp.pop %v265
    %v273 = vmul.f32 1.0, %v272
    %v274 = vld [vmem:[%s2] sm:$0xff]
    %v275 = vld [vmem:[%s2 + $0x8] sm:$0xff]
    %v276 = vld [vmem:[%s2 + $0x10] sm:$0xff]
    %v277 = vld [vmem:[%s2 + $0x18] sm:$0xff]
    %279 = vset.pattern.permute.xlu0 0
    %280 = vperm.xlu0 %279, %v274
    %v281 = vpop.permute.xlu0 %280
    %284 = vset.pattern.permute.xlu0 0
    %285 = vperm.xlu0 %284, %v275
    %v286 = vpop.permute.xlu0 %285
    %289 = vset.pattern.permute.xlu0 0
    %290 = vperm.xlu0 %289, %v276
    %v291 = vpop.permute.xlu0 %290
    %294 = vset.pattern.permute.xlu0 0
    %295 = vperm.xlu0 %294, %v277
    %v296 = vpop.permute.xlu0 %295
    %v298 = vadd.f32 %v200, %v281
    %v299 = vadd.f32 %v205, %v286
    %v300 = vadd.f32 %v210, %v291
    %v301 = vadd.f32 %v215, %v296
    %v302 = vmul.f32 %v239, %v298
    %v303 = vmul.f32 %v241, %v299
    %v304 = vmul.f32 %v243, %v300
    %v305 = vmul.f32 %v245, %v301
    %v306 = vadd.f32 %v40, %v302
    %v307 = vadd.f32 %v41, %v303
    %v308 = vadd.f32 %v42, %v304
    %v309 = vadd.f32 %v43, %v305
    %v310 = vtanh.pop %v306
    %v311 = vtanh.pop %v307
    %v312 = vtanh.pop %v308
    %v313 = vtanh.pop %v309
    %v314 = vsub.f32 1.0, %v267
    %v315 = vsub.f32 1.0, %v269
    %v316 = vsub.f32 1.0, %v271
    %v317 = vsub.f32 1.0, %v273
    %v318 = vmul.f32 %v314, %v310
    %v319 = vmul.f32 %v315, %v311
    %v320 = vmul.f32 %v316, %v312
    %v321 = vmul.f32 %v317, %v313
    %v322 = vmul.f32 %v267, 0.0
    %v323 = vmul.f32 %v269, 0.0
    %v324 = vmul.f32 %v271, 0.0
    %v325 = vmul.f32 %v273, 0.0
    %v326 = vadd.f32 %v318, %v322
    %v327 = vadd.f32 %v319, %v323
    %v328 = vadd.f32 %v320, %v324
    %v329 = vadd.f32 %v321, %v325
    %s330 = scalar_lea.vmem [#allocation2], 96
    %v331 = vld [vmem:[%s330] sm:$0xff]
    %v332 = vld [vmem:[%s330 + $0x8] sm:$0xff]
    %v333 = vld [vmem:[%s330 + $0x10] sm:$0xff]
    %v334 = vld [vmem:[%s330 + $0x18] sm:$0xff]
    %v335 = vld [vmem:[%s330 + $0x20] sm:$0xff]
    %v336 = vld [vmem:[%s330 + $0x28] sm:$0xff]
    %v337 = vld [vmem:[%s330 + $0x30] sm:$0xff]
    %v338 = vld [vmem:[%s330 + $0x38] sm:$0xff]
    %v339 = vld [vmem:[%s330 + $0x40] sm:$0xff]
    %v340 = vld [vmem:[%s330 + $0x48] sm:$0xff]
    %v341 = vld [vmem:[%s330 + $0x50] sm:$0xff]
    %v342 = vld [vmem:[%s330 + $0x58] sm:$0xff]
    %343 = vmatprep.subr.mxu0 0.0
    %344 = vmatpush1.msra.mxu0 %v326
    %345 = vmatprep.subr.mxu0 0.0
    %346 = vmatpush1.msra.mxu0 %v327
    %347 = vmatprep.subr.mxu0 0.0
    %348 = vmatpush1.msra.mxu0 %v328
    %349 = vmatprep.subr.mxu0 0.0
    %350 = vmatpush1.msra.mxu0 %v329
    %351 = vmatprep.subr.mxu0 0.0
    %352 = vmatpush1.msra.mxu0 0.0
    %353 = vmatprep.subr.mxu0 0.0
    %354 = vmatpush1.msra.mxu0 0.0
    %355 = vmatprep.subr.mxu0 0.0
    %356 = vmatpush1.msra.mxu0 0.0
    %357 = vmatprep.subr.mxu0 0.0
    %358 = vmatpush1.msra.mxu0 0.0
    %359 = vmatprep.subr.mxu0 0.0
    %360 = vmatpush1.msra.mxu0 0.0
    %361 = vmatprep.subr.mxu0 0.0
    %362 = vmatpush1.msra.mxu0 0.0
    %363 = vmatprep.subr.mxu0 0.0
    %364 = vmatpush1.msra.mxu0 0.0
    %365 = vmatprep.subr.mxu0 0.0
    %366 = vmatpush1.msra.mxu0 0.0
    %367 = vmatprep.subr.mxu0 0.0
    %368 = vmatpush1.msra.mxu0 0.0
    %369 = vmatprep.subr.mxu0 0.0
    %370 = vmatpush1.msra.mxu0 0.0
    %371 = vmatprep.subr.mxu0 0.0
    %372 = vmatpush1.msra.mxu0 0.0
    %373 = vmatprep.subr.mxu0 0.0
    %374 = vmatpush1.msra.mxu0 0.0
    %375 = vmatprep.subr.mxu0 0.0
    %376 = vmatpush1.msra.mxu0 0.0
    %377 = vmatprep.subr.mxu0 0.0
    %378 = vmatpush1.msra.mxu0 0.0
    %379 = vmatprep.subr.mxu0 0.0
    %380 = vmatpush1.msra.mxu0 0.0
    %381 = vmatprep.subr.mxu0 0.0
    %382 = vmatpush1.msra.mxu0 0.0
    %383 = vmatprep.subr.mxu0 0.0
    %384 = vmatpush1.msra.mxu0 0.0
    %385 = vmatprep.subr.mxu0 0.0
    %386 = vmatpush1.msra.mxu0 0.0
    %387 = vmatprep.subr.mxu0 0.0
    %388 = vmatpush1.msra.mxu0 0.0
    %389 = vmatprep.subr.mxu0 0.0
    %390 = vmatpush1.msra.mxu0 0.0
    %391 = vmatprep.subr.mxu0 0.0
    %392 = vmatpush1.msra.mxu0 0.0
    %393 = vmatprep.subr.mxu0 0.0
    %394 = vmatpush1.msra.mxu0 0.0
    %395 = vmatprep.subr.mxu0 0.0
    %396 = vmatpush1.msra.mxu0 0.0
    %397 = vmatprep.subr.mxu0 0.0
    %398 = vmatpush1.msra.mxu0 0.0
    %399 = vmatprep.subr.mxu0 0.0
    %400 = vmatpush1.msra.mxu0 0.0
    %401 = vmatprep.subr.mxu0 0.0
    %402 = vmatpush1.msra.mxu0 0.0
    %403 = vmatprep.subr.mxu0 0.0
    %404 = vmatpush1.msra.mxu0 0.0
    %405 = vmatprep.subr.mxu0 0.0
    %406 = vmatpush1.msra.mxu0 0.0
    %407 = vmatprep.mubr.f32.mxu0 0.0
    %408 = vmatmul.mubr.f32.gmra.mrb[0].mxu0 %v58
    %v409 = vpop.f32.mrb[0].mxu0
    %v410 = vadd.f32 0.0, %v409
    %v411 = vpop.f32.mrb[0].mxu0
    %412 = vmatprep.mubr.f32.mxu0 0.0
    %413 = vmatmul.mubr.f32.gmra.mrb[0].mxu0 %v61
    %v414 = vpop.f32.mrb[0].mxu0
    %v415 = vadd.f32 0.0, %v414
    %v416 = vpop.f32.mrb[0].mxu0
    %417 = vmatprep.mubr.f32.mxu0 0.0
    %418 = vmatmul.mubr.f32.gmra.mrb[0].mxu0 %v64
    %v419 = vpop.f32.mrb[0].mxu0
    %v420 = vadd.f32 0.0, %v419
    %v421 = vpop.f32.mrb[0].mxu0
    %422 = vmatprep.mubr.f32.mxu0 0.0
    %423 = vmatmul.mubr.f32.gmra.mrb[0].mxu0 %v67
    %v424 = vpop.f32.mrb[0].mxu0
    %v425 = vadd.f32 0.0, %v424
    %v426 = vpop.f32.mrb[0].mxu0
    %427 = vmatprep.mubr.f32.mxu0 0.0
    %428 = vmatmul.mubr.f32.gmra.mrb[0].mxu0 %v70
    %v429 = vpop.f32.mrb[0].mxu0
    %v430 = vadd.f32 0.0, %v429
    %v431 = vpop.f32.mrb[0].mxu0
    %432 = vmatprep.mubr.f32.mxu0 0.0
    %433 = vmatmul.mubr.f32.gmra.mrb[0].mxu0 %v73
    %v434 = vpop.f32.mrb[0].mxu0
    %v435 = vadd.f32 0.0, %v434
    %v436 = vpop.f32.mrb[0].mxu0
    %437 = vmatprep.mubr.f32.mxu0 0.0
    %438 = vmatmul.mubr.f32.gmra.mrb[0].mxu0 %v76
    %v439 = vpop.f32.mrb[0].mxu0
    %v440 = vadd.f32 0.0, %v439
    %v441 = vpop.f32.mrb[0].mxu0
    %442 = vmatprep.mubr.f32.mxu0 0.0
    %443 = vmatmul.mubr.f32.gmra.mrb[0].mxu0 %v79
    %v444 = vpop.f32.mrb[0].mxu0
    %v445 = vadd.f32 0.0, %v444
    %v446 = vpop.f32.mrb[0].mxu0
    %447 = vmatprep.mubr.f32.mxu0 0.0
    %448 = vmatmul.mubr.f32.gmra.mrb[0].mxu0 %v82
    %v449 = vpop.f32.mrb[0].mxu0
    %v450 = vadd.f32 0.0, %v449
    %v451 = vpop.f32.mrb[0].mxu0
    %452 = vmatprep.mubr.f32.mxu0 0.0
    %453 = vmatmul.mubr.f32.gmra.mrb[0].mxu0 %v85
    %v454 = vpop.f32.mrb[0].mxu0
    %v455 = vadd.f32 0.0, %v454
    %v456 = vpop.f32.mrb[0].mxu0
    %457 = vmatprep.mubr.f32.mxu0 0.0
    %458 = vmatmul.mubr.f32.gmra.mrb[0].mxu0 %v88
    %v459 = vpop.f32.mrb[0].mxu0
    %v460 = vadd.f32 0.0, %v459
    %v461 = vpop.f32.mrb[0].mxu0
    %462 = vmatprep.mubr.f32.mxu0 0.0
    %463 = vmatmul.mubr.f32.gmra.mrb[0].mxu0 %v91
    %v464 = vpop.f32.mrb[0].mxu0
    %v465 = vadd.f32 0.0, %v464
    %v466 = vpop.f32.mrb[0].mxu0
    %467 = vdwg.mxu0
    %v468 = vadd.f32 %v331, %v410
    %v469 = vadd.f32 %v332, %v415
    %v470 = vadd.f32 %v333, %v420
    %v471 = vadd.f32 %v334, %v425
    %v472 = vxor.u32 %v468, 2147483648
    %v473 = vxor.u32 %v469, 2147483648
    %v474 = vxor.u32 %v470, 2147483648
    %v475 = vxor.u32 %v471, 2147483648
    %v476 = vmul.f32 %v472, 1.442695
    %v477 = vpow.pop %v476
    %v478 = vmul.f32 %v473, 1.442695
    %v479 = vpow.pop %v478
    %v480 = vmul.f32 %v474, 1.442695
    %v481 = vpow.pop %v480
    %v482 = vmul.f32 %v475, 1.442695
    %v483 = vpow.pop %v482
    %v484 = vadd.f32 %v477, 1.0
    %v485 = vadd.f32 %v479, 1.0
    %v486 = vadd.f32 %v481, 1.0
    %v487 = vadd.f32 %v483, 1.0
    %v488 = vrcp.pop %v484
    %v489 = vmul.f32 1.0, %v488
    %v490 = vrcp.pop %v485
    %v491 = vmul.f32 1.0, %v490
    %v492 = vrcp.pop %v486
    %v493 = vmul.f32 1.0, %v492
    %v494 = vrcp.pop %v487
    %v495 = vmul.f32 1.0, %v494
    %v496 = vadd.f32 %v335, %v430
    %v497 = vadd.f32 %v336, %v435
    %v498 = vadd.f32 %v337, %v440
    %v499 = vadd.f32 %v338, %v445
    %v500 = vxor.u32 %v496, 2147483648
    %v501 = vxor.u32 %v497, 2147483648
    %v502 = vxor.u32 %v498, 2147483648
    %v503 = vxor.u32 %v499, 2147483648
    %v504 = vmul.f32 %v500, 1.442695
    %v505 = vpow.pop %v504
    %v506 = vmul.f32 %v501, 1.442695
    %v507 = vpow.pop %v506
    %v508 = vmul.f32 %v502, 1.442695
    %v509 = vpow.pop %v508
    %v510 = vmul.f32 %v503, 1.442695
    %v511 = vpow.pop %v510
    %v512 = vadd.f32 %v505, 1.0
    %v513 = vadd.f32 %v507, 1.0
    %v514 = vadd.f32 %v509, 1.0
    %v515 = vadd.f32 %v511, 1.0
    %v516 = vrcp.pop %v512
    %v517 = vmul.f32 1.0, %v516
    %v518 = vrcp.pop %v513
    %v519 = vmul.f32 1.0, %v518
    %v520 = vrcp.pop %v514
    %v521 = vmul.f32 1.0, %v520
    %v522 = vrcp.pop %v515
    %v523 = vmul.f32 1.0, %v522
    %v524 = vadd.f32 %v450, %v281
    %v525 = vadd.f32 %v455, %v286
    %v526 = vadd.f32 %v460, %v291
    %v527 = vadd.f32 %v465, %v296
    %v528 = vmul.f32 %v489, %v524
    %v529 = vmul.f32 %v491, %v525
    %v530 = vmul.f32 %v493, %v526
    %v531 = vmul.f32 %v495, %v527
    %v532 = vadd.f32 %v339, %v528
    %v533 = vadd.f32 %v340, %v529
    %v534 = vadd.f32 %v341, %v530
    %v535 = vadd.f32 %v342, %v531
    %v536 = vtanh.pop %v532
    %v537 = vtanh.pop %v533
    %v538 = vtanh.pop %v534
    %v539 = vtanh.pop %v535
    %v540 = vsub.f32 1.0, %v517
    %v541 = vsub.f32 1.0, %v519
    %v542 = vsub.f32 1.0, %v521
    %v543 = vsub.f32 1.0, %v523
    %v544 = vmul.f32 %v540, %v536
    %v545 = vmul.f32 %v541, %v537
    %v546 = vmul.f32 %v542, %v538
    %v547 = vmul.f32 %v543, %v539
    %v548 = vmul.f32 %v517, %v326
    %v549 = vmul.f32 %v519, %v327
    %v550 = vmul.f32 %v521, %v328
    %v551 = vmul.f32 %v523, %v329
    %v552 = vadd.f32 %v544, %v548
    %v553 = vadd.f32 %v545, %v549
    %v554 = vadd.f32 %v546, %v550
    %v555 = vadd.f32 %v547, %v551
    %s556 = scalar_lea.vmem [#allocation2], 192
    %v557 = vld [vmem:[%s556] sm:$0xff]
    %v558 = vld [vmem:[%s556 + $0x8] sm:$0xff]
    %v559 = vld [vmem:[%s556 + $0x10] sm:$0xff]
    %v560 = vld [vmem:[%s556 + $0x18] sm:$0xff]
    %v561 = vld [vmem:[%s556 + $0x20] sm:$0xff]
    %v562 = vld [vmem:[%s556 + $0x28] sm:$0xff]
    %v563 = vld [vmem:[%s556 + $0x30] sm:$0xff]
    %v564 = vld [vmem:[%s556 + $0x38] sm:$0xff]
    %v565 = vld [vmem:[%s556 + $0x40] sm:$0xff]
    %v566 = vld [vmem:[%s556 + $0x48] sm:$0xff]
    %v567 = vld [vmem:[%s556 + $0x50] sm:$0xff]
    %v568 = vld [vmem:[%s556 + $0x58] sm:$0xff]
    %569 = vmatprep.subr.mxu0 0.0
    %570 = vmatpush1.msra.mxu0 %v552
    %571 = vmatprep.subr.mxu0 0.0
    %572 = vmatpush1.msra.mxu0 %v553
    %573 = vmatprep.subr.mxu0 0.0
    %574 = vmatpush1.msra.mxu0 %v554
    %575 = vmatprep.subr.mxu0 0.0
    %576 = vmatpush1.msra.mxu0 %v555
    %577 = vmatprep.subr.mxu0 0.0
    %578 = vmatpush1.msra.mxu0 0.0
    %579 = vmatprep.subr.mxu0 0.0
    %580 = vmatpush1.msra.mxu0 0.0
    %581 = vmatprep.subr.mxu0 0.0
    %582 = vmatpush1.msra.mxu0 0.0
    %583 = vmatprep.subr.mxu0 0.0
    %584 = vmatpush1.msra.mxu0 0.0
    %585 = vmatprep.subr.mxu0 0.0
    %586 = vmatpush1.msra.mxu0 0.0
    %587 = vmatprep.subr.mxu0 0.0
    %588 = vmatpush1.msra.mxu0 0.0
    %589 = vmatprep.subr.mxu0 0.0
    %590 = vmatpush1.msra.mxu0 0.0
    %591 = vmatprep.subr.mxu0 0.0
    %592 = vmatpush1.msra.mxu0 0.0
    %593 = vmatprep.subr.mxu0 0.0
    %594 = vmatpush1.msra.mxu0 0.0
    %595 = vmatprep.subr.mxu0 0.0
    %596 = vmatpush1.msra.mxu0 0.0
    %597 = vmatprep.subr.mxu0 0.0
    %598 = vmatpush1.msra.mxu0 0.0
    %599 = vmatprep.subr.mxu0 0.0
    %600 = vmatpush1.msra.mxu0 0.0
    %601 = vmatprep.subr.mxu0 0.0
    %602 = vmatpush1.msra.mxu0 0.0
    %603 = vmatprep.subr.mxu0 0.0
    %604 = vmatpush1.msra.mxu0 0.0
    %605 = vmatprep.subr.mxu0 0.0
    %606 = vmatpush1.msra.mxu0 0.0
    %607 = vmatprep.subr.mxu0 0.0
    %608 = vmatpush1.msra.mxu0 0.0
    %609 = vmatprep.subr.mxu0 0.0
    %610 = vmatpush1.msra.mxu0 0.0
    %611 = vmatprep.subr.mxu0 0.0
    %612 = vmatpush1.msra.mxu0 0.0
    %613 = vmatprep.subr.mxu0 0.0
    %614 = vmatpush1.msra.mxu0 0.0
    %615 = vmatprep.subr.mxu0 0.0
    %616 = vmatpush1.msra.mxu0 0.0
    %617 = vmatprep.subr.mxu0 0.0
    %618 = vmatpush1.msra.mxu0 0.0
    %619 = vmatprep.subr.mxu0 0.0
    %620 = vmatpush1.msra.mxu0 0.0
    %621 = vmatprep.subr.mxu0 0.0
    %622 = vmatpush1.msra.mxu0 0.0
    %623 = vmatprep.subr.mxu0 0.0
    %624 = vmatpush1.msra.mxu0 0.0
    %625 = vmatprep.subr.mxu0 0.0
    %626 = vmatpush1.msra.mxu0 0.0
    %627 = vmatprep.subr.mxu0 0.0
    %628 = vmatpush1.msra.mxu0 0.0
    %629 = vmatprep.subr.mxu0 0.0
    %630 = vmatpush1.msra.mxu0 0.0
    %631 = vmatprep.subr.mxu0 0.0
    %632 = vmatpush1.msra.mxu0 0.0
    %633 = vmatprep.mubr.f32.mxu0 0.0
    %634 = vmatmul.mubr.f32.gmra.mrb[0].mxu0 %v58
    %v635 = vpop.f32.mrb[0].mxu0
    %v636 = vadd.f32 0.0, %v635
    %v637 = vpop.f32.mrb[0].mxu0
    %638 = vmatprep.mubr.f32.mxu0 0.0
    %639 = vmatmul.mubr.f32.gmra.mrb[0].mxu0 %v61
    %v640 = vpop.f32.mrb[0].mxu0
    %v641 = vadd.f32 0.0, %v640
    %v642 = vpop.f32.mrb[0].mxu0
    %643 = vmatprep.mubr.f32.mxu0 0.0
    %644 = vmatmul.mubr.f32.gmra.mrb[0].mxu0 %v64
    %v645 = vpop.f32.mrb[0].mxu0
    %v646 = vadd.f32 0.0, %v645
    %v647 = vpop.f32.mrb[0].mxu0
    %648 = vmatprep.mubr.f32.mxu0 0.0
    %649 = vmatmul.mubr.f32.gmra.mrb[0].mxu0 %v67
    %v650 = vpop.f32.mrb[0].mxu0
    %v651 = vadd.f32 0.0, %v650
    %v652 = vpop.f32.mrb[0].mxu0
    %653 = vmatprep.mubr.f32.mxu0 0.0
    %654 = vmatmul.mubr.f32.gmra.mrb[0].mxu0 %v70
    %v655 = vpop.f32.mrb[0].mxu0
    %v656 = vadd.f32 0.0, %v655
    %v657 = vpop.f32.mrb[0].mxu0
    %658 = vmatprep.mubr.f32.mxu0 0.0
    %659 = vmatmul.mubr.f32.gmra.mrb[0].mxu0 %v73
    %v660 = vpop.f32.mrb[0].mxu0
    %v661 = vadd.f32 0.0, %v660
    %v662 = vpop.f32.mrb[0].mxu0
    %663 = vmatprep.mubr.f32.mxu0 0.0
    %664 = vmatmul.mubr.f32.gmra.mrb[0].mxu0 %v76
    %v665 = vpop.f32.mrb[0].mxu0
    %v666 = vadd.f32 0.0, %v665
    %v667 = vpop.f32.mrb[0].mxu0
    %668 = vmatprep.mubr.f32.mxu0 0.0
    %669 = vmatmul.mubr.f32.gmra.mrb[0].mxu0 %v79
    %v670 = vpop.f32.mrb[0].mxu0
    %v671 = vadd.f32 0.0, %v670
    %v672 = vpop.f32.mrb[0].mxu0
    %673 = vmatprep.mubr.f32.mxu0 0.0
    %674 = vmatmul.mubr.f32.gmra.mrb[0].mxu0 %v82
    %v675 = vpop.f32.mrb[0].mxu0
    %v676 = vadd.f32 0.0, %v675
    %v677 = vpop.f32.mrb[0].mxu0
    %678 = vmatprep.mubr.f32.mxu0 0.0
    %679 = vmatmul.mubr.f32.gmra.mrb[0].mxu0 %v85
    %v680 = vpop.f32.mrb[0].mxu0
    %v681 = vadd.f32 0.0, %v680
    %v682 = vpop.f32.mrb[0].mxu0
    %683 = vmatprep.mubr.f32.mxu0 0.0
    %684 = vmatmul.mubr.f32.gmra.mrb[0].mxu0 %v88
    %v685 = vpop.f32.mrb[0].mxu0
    %v686 = vadd.f32 0.0, %v685
    %v687 = vpop.f32.mrb[0].mxu0
    %688 = vmatprep.mubr.f32.mxu0 0.0
    %689 = vmatmul.mubr.f32.gmra.mrb[0].mxu0 %v91
    %v690 = vpop.f32.mrb[0].mxu0
    %v691 = vadd.f32 0.0, %v690
    %v692 = vpop.f32.mrb[0].mxu0
    %693 = vdwg.mxu0
    %v694 = vadd.f32 %v557, %v636
    %v695 = vadd.f32 %v558, %v641
    %v696 = vadd.f32 %v559, %v646
    %v697 = vadd.f32 %v560, %v651
    %v698 = vxor.u32 %v694, 2147483648
    %v699 = vxor.u32 %v695, 2147483648
    %v700 = vxor.u32 %v696, 2147483648
    %v701 = vxor.u32 %v697, 2147483648
    %v702 = vmul.f32 %v698, 1.442695
    %v703 = vpow.pop %v702
    %v704 = vmul.f32 %v699, 1.442695
    %v705 = vpow.pop %v704
    %v706 = vmul.f32 %v700, 1.442695
    %v707 = vpow.pop %v706
    %v708 = vmul.f32 %v701, 1.442695
    %v709 = vpow.pop %v708
    %v710 = vadd.f32 %v703, 1.0
    %v711 = vadd.f32 %v705, 1.0
    %v712 = vadd.f32 %v707, 1.0
    %v713 = vadd.f32 %v709, 1.0
    %v714 = vrcp.pop %v710
    %v715 = vmul.f32 1.0, %v714
    %v716 = vrcp.pop %v711
    %v717 = vmul.f32 1.0, %v716
    %v718 = vrcp.pop %v712
    %v719 = vmul.f32 1.0, %v718
    %v720 = vrcp.pop %v713
    %v721 = vmul.f32 1.0, %v720
    %v722 = vadd.f32 %v561, %v656
    %v723 = vadd.f32 %v562, %v661
    %v724 = vadd.f32 %v563, %v666
    %v725 = vadd.f32 %v564, %v671
    %v726 = vxor.u32 %v722, 2147483648
    %v727 = vxor.u32 %v723, 2147483648
    %v728 = vxor.u32 %v724, 2147483648
    %v729 = vxor.u32 %v725, 2147483648
    %v730 = vmul.f32 %v726, 1.442695
    %v731 = vpow.pop %v730
    %v732 = vmul.f32 %v727, 1.442695
    %v733 = vpow.pop %v732
    %v734 = vmul.f32 %v728, 1.442695
    %v735 = vpow.pop %v734
    %v736 = vmul.f32 %v729, 1.442695
    %v737 = vpow.pop %v736
    %v738 = vadd.f32 %v731, 1.0
    %v739 = vadd.f32 %v733, 1.0
    %v740 = vadd.f32 %v735, 1.0
    %v741 = vadd.f32 %v737, 1.0
    %v742 = vrcp.pop %v738
    %v743 = vmul.f32 1.0, %v742
    %v744 = vrcp.pop %v739
    %v745 = vmul.f32 1.0, %v744
    %v746 = vrcp.pop %v740
    %v747 = vmul.f32 1.0, %v746
    %v748 = vrcp.pop %v741
    %v749 = vmul.f32 1.0, %v748
    %v750 = vadd.f32 %v676, %v281
    %v751 = vadd.f32 %v681, %v286
    %v752 = vadd.f32 %v686, %v291
    %v753 = vadd.f32 %v691, %v296
    %v754 = vmul.f32 %v715, %v750
    %v755 = vmul.f32 %v717, %v751
    %v756 = vmul.f32 %v719, %v752
    %v757 = vmul.f32 %v721, %v753
    %v758 = vadd.f32 %v565, %v754
    %v759 = vadd.f32 %v566, %v755
    %v760 = vadd.f32 %v567, %v756
    %v761 = vadd.f32 %v568, %v757
    %v762 = vtanh.pop %v758
    %v763 = vtanh.pop %v759
    %v764 = vtanh.pop %v760
    %v765 = vtanh.pop %v761
    %v766 = vsub.f32 1.0, %v743
    %v767 = vsub.f32 1.0, %v745
    %v768 = vsub.f32 1.0, %v747
    %v769 = vsub.f32 1.0, %v749
    %v770 = vmul.f32 %v766, %v762
    %v771 = vmul.f32 %v767, %v763
    %v772 = vmul.f32 %v768, %v764
    %v773 = vmul.f32 %v769, %v765
    %v774 = vmul.f32 %v743, %v552
    %v775 = vmul.f32 %v745, %v553
    %v776 = vmul.f32 %v747, %v554
    %v777 = vmul.f32 %v749, %v555
    %v778 = vadd.f32 %v770, %v774
    %v779 = vadd.f32 %v771, %v775
    %v780 = vadd.f32 %v772, %v776
    %v781 = vadd.f32 %v773, %v777
    %s782 = scalar_lea.vmem [#allocation2], 288
    %v783 = vld [vmem:[%s782] sm:$0xff]
    %v784 = vld [vmem:[%s782 + $0x8] sm:$0xff]
    %v785 = vld [vmem:[%s782 + $0x10] sm:$0xff]
    %v786 = vld [vmem:[%s782 + $0x18] sm:$0xff]
    %v787 = vld [vmem:[%s782 + $0x20] sm:$0xff]
    %v788 = vld [vmem:[%s782 + $0x28] sm:$0xff]
    %v789 = vld [vmem:[%s782 + $0x30] sm:$0xff]
    %v790 = vld [vmem:[%s782 + $0x38] sm:$0xff]
    %v791 = vld [vmem:[%s782 + $0x40] sm:$0xff]
    %v792 = vld [vmem:[%s782 + $0x48] sm:$0xff]
    %v793 = vld [vmem:[%s782 + $0x50] sm:$0xff]
    %v794 = vld [vmem:[%s782 + $0x58] sm:$0xff]
    %795 = vmatprep.subr.mxu0 0.0
    %796 = vmatpush1.msra.mxu0 %v778
    %797 = vmatprep.subr.mxu0 0.0
    %798 = vmatpush1.msra.mxu0 %v779
    %799 = vmatprep.subr.mxu0 0.0
    %800 = vmatpush1.msra.mxu0 %v780
    %801 = vmatprep.subr.mxu0 0.0
    %802 = vmatpush1.msra.mxu0 %v781
    %803 = vmatprep.subr.mxu0 0.0
    %804 = vmatpush1.msra.mxu0 0.0
    %805 = vmatprep.subr.mxu0 0.0
    %806 = vmatpush1.msra.mxu0 0.0
    %807 = vmatprep.subr.mxu0 0.0
    %808 = vmatpush1.msra.mxu0 0.0
    %809 = vmatprep.subr.mxu0 0.0
    %810 = vmatpush1.msra.mxu0 0.0
    %811 = vmatprep.subr.mxu0 0.0
    %812 = vmatpush1.msra.mxu0 0.0
    %813 = vmatprep.subr.mxu0 0.0
    %814 = vmatpush1.msra.mxu0 0.0
    %815 = vmatprep.subr.mxu0 0.0
    %816 = vmatpush1.msra.mxu0 0.0
    %817 = vmatprep.subr.mxu0 0.0
    %818 = vmatpush1.msra.mxu0 0.0
    %819 = vmatprep.subr.mxu0 0.0
    %820 = vmatpush1.msra.mxu0 0.0
    %821 = vmatprep.subr.mxu0 0.0
    %822 = vmatpush1.msra.mxu0 0.0
    %823 = vmatprep.subr.mxu0 0.0
    %824 = vmatpush1.msra.mxu0 0.0
    %825 = vmatprep.subr.mxu0 0.0
    %826 = vmatpush1.msra.mxu0 0.0
    %827 = vmatprep.subr.mxu0 0.0
    %828 = vmatpush1.msra.mxu0 0.0
    %829 = vmatprep.subr.mxu0 0.0
    %830 = vmatpush1.msra.mxu0 0.0
    %831 = vmatprep.subr.mxu0 0.0
    %832 = vmatpush1.msra.mxu0 0.0
    %833 = vmatprep.subr.mxu0 0.0
    %834 = vmatpush1.msra.mxu0 0.0
    %835 = vmatprep.subr.mxu0 0.0
    %836 = vmatpush1.msra.mxu0 0.0
    %837 = vmatprep.subr.mxu0 0.0
    %838 = vmatpush1.msra.mxu0 0.0
    %839 = vmatprep.subr.mxu0 0.0
    %840 = vmatpush1.msra.mxu0 0.0
    %841 = vmatprep.subr.mxu0 0.0
    %842 = vmatpush1.msra.mxu0 0.0
    %843 = vmatprep.subr.mxu0 0.0
    %844 = vmatpush1.msra.mxu0 0.0
    %845 = vmatprep.subr.mxu0 0.0
    %846 = vmatpush1.msra.mxu0 0.0
    %847 = vmatprep.subr.mxu0 0.0
    %848 = vmatpush1.msra.mxu0 0.0
    %849 = vmatprep.subr.mxu0 0.0
    %850 = vmatpush1.msra.mxu0 0.0
    %851 = vmatprep.subr.mxu0 0.0
    %852 = vmatpush1.msra.mxu0 0.0
    %853 = vmatprep.subr.mxu0 0.0
    %854 = vmatpush1.msra.mxu0 0.0
    %855 = vmatprep.subr.mxu0 0.0
    %856 = vmatpush1.msra.mxu0 0.0
    %857 = vmatprep.subr.mxu0 0.0
    %858 = vmatpush1.msra.mxu0 0.0
    %859 = vmatprep.mubr.f32.mxu0 0.0
    %860 = vmatmul.mubr.f32.gmra.mrb[0].mxu0 %v58
    %v861 = vpop.f32.mrb[0].mxu0
    %v862 = vadd.f32 0.0, %v861
    %v863 = vpop.f32.mrb[0].mxu0
    %864 = vmatprep.mubr.f32.mxu0 0.0
    %865 = vmatmul.mubr.f32.gmra.mrb[0].mxu0 %v61
    %v866 = vpop.f32.mrb[0].mxu0
    %v867 = vadd.f32 0.0, %v866
    %v868 = vpop.f32.mrb[0].mxu0
    %869 = vmatprep.mubr.f32.mxu0 0.0
    %870 = vmatmul.mubr.f32.gmra.mrb[0].mxu0 %v64
    %v871 = vpop.f32.mrb[0].mxu0
    %v872 = vadd.f32 0.0, %v871
    %v873 = vpop.f32.mrb[0].mxu0
    %874 = vmatprep.mubr.f32.mxu0 0.0
    %875 = vmatmul.mubr.f32.gmra.mrb[0].mxu0 %v67
    %v876 = vpop.f32.mrb[0].mxu0
    %v877 = vadd.f32 0.0, %v876
    %v878 = vpop.f32.mrb[0].mxu0
    %879 = vmatprep.mubr.f32.mxu0 0.0
    %880 = vmatmul.mubr.f32.gmra.mrb[0].mxu0 %v70
    %v881 = vpop.f32.mrb[0].mxu0
    %v882 = vadd.f32 0.0, %v881
    %v883 = vpop.f32.mrb[0].mxu0
    %884 = vmatprep.mubr.f32.mxu0 0.0
    %885 = vmatmul.mubr.f32.gmra.mrb[0].mxu0 %v73
    %v886 = vpop.f32.mrb[0].mxu0
    %v887 = vadd.f32 0.0, %v886
    %v888 = vpop.f32.mrb[0].mxu0
    %889 = vmatprep.mubr.f32.mxu0 0.0
    %890 = vmatmul.mubr.f32.gmra.mrb[0].mxu0 %v76
    %v891 = vpop.f32.mrb[0].mxu0
    %v892 = vadd.f32 0.0, %v891
    %v893 = vpop.f32.mrb[0].mxu0
    %894 = vmatprep.mubr.f32.mxu0 0.0
    %895 = vmatmul.mubr.f32.gmra.mrb[0].mxu0 %v79
    %v896 = vpop.f32.mrb[0].mxu0
    %v897 = vadd.f32 0.0, %v896
    %v898 = vpop.f32.mrb[0].mxu0
    %899 = vmatprep.mubr.f32.mxu0 0.0
    %900 = vmatmul.mubr.f32.gmra.mrb[0].mxu0 %v82
    %v901 = vpop.f32.mrb[0].mxu0
    %v902 = vadd.f32 0.0, %v901
    %v903 = vpop.f32.mrb[0].mxu0
    %904 = vmatprep.mubr.f32.mxu0 0.0
    %905 = vmatmul.mubr.f32.gmra.mrb[0].mxu0 %v85
    %v906 = vpop.f32.mrb[0].mxu0
    %v907 = vadd.f32 0.0, %v906
    %v908 = vpop.f32.mrb[0].mxu0
    %909 = vmatprep.mubr.f32.mxu0 0.0
    %910 = vmatmul.mubr.f32.gmra.mrb[0].mxu0 %v88
    %v911 = vpop.f32.mrb[0].mxu0
    %v912 = vadd.f32 0.0, %v911
    %v913 = vpop.f32.mrb[0].mxu0
    %914 = vmatprep.mubr.f32.mxu0 0.0
    %915 = vmatmul.mubr.f32.gmra.mrb[0].mxu0 %v91
    %v916 = vpop.f32.mrb[0].mxu0
    %v917 = vadd.f32 0.0, %v916
    %v918 = vpop.f32.mrb[0].mxu0
    %919 = vdwg.mxu0
    %v920 = vadd.f32 %v783, %v862
    %v921 = vadd.f32 %v784, %v867
    %v922 = vadd.f32 %v785, %v872
    %v923 = vadd.f32 %v786, %v877
    %v924 = vxor.u32 %v920, 2147483648
    %v925 = vxor.u32 %v921, 2147483648
    %v926 = vxor.u32 %v922, 2147483648
    %v927 = vxor.u32 %v923, 2147483648
    %v928 = vmul.f32 %v924, 1.442695
    %v929 = vpow.pop %v928
    %v930 = vmul.f32 %v925, 1.442695
    %v931 = vpow.pop %v930
    %v932 = vmul.f32 %v926, 1.442695
    %v933 = vpow.pop %v932
    %v934 = vmul.f32 %v927, 1.442695
    %v935 = vpow.pop %v934
    %v936 = vadd.f32 %v929, 1.0
    %v937 = vadd.f32 %v931, 1.0
    %v938 = vadd.f32 %v933, 1.0
    %v939 = vadd.f32 %v935, 1.0
    %v940 = vrcp.pop %v936
    %v941 = vmul.f32 1.0, %v940
    %v942 = vrcp.pop %v937
    %v943 = vmul.f32 1.0, %v942
    %v944 = vrcp.pop %v938
    %v945 = vmul.f32 1.0, %v944
    %v946 = vrcp.pop %v939
    %v947 = vmul.f32 1.0, %v946
    %v948 = vadd.f32 %v787, %v882
    %v949 = vadd.f32 %v788, %v887
    %v950 = vadd.f32 %v789, %v892
    %v951 = vadd.f32 %v790, %v897
    %v952 = vxor.u32 %v948, 2147483648
    %v953 = vxor.u32 %v949, 2147483648
    %v954 = vxor.u32 %v950, 2147483648
    %v955 = vxor.u32 %v951, 2147483648
    %v956 = vmul.f32 %v952, 1.442695
    %v957 = vpow.pop %v956
    %v958 = vmul.f32 %v953, 1.442695
    %v959 = vpow.pop %v958
    %v960 = vmul.f32 %v954, 1.442695
    %v961 = vpow.pop %v960
    %v962 = vmul.f32 %v955, 1.442695
    %v963 = vpow.pop %v962
    %v964 = vadd.f32 %v957, 1.0
    %v965 = vadd.f32 %v959, 1.0
    %v966 = vadd.f32 %v961, 1.0
    %v967 = vadd.f32 %v963, 1.0
    %v968 = vrcp.pop %v964
    %v969 = vmul.f32 1.0, %v968
    %v970 = vrcp.pop %v965
    %v971 = vmul.f32 1.0, %v970
    %v972 = vrcp.pop %v966
    %v973 = vmul.f32 1.0, %v972
    %v974 = vrcp.pop %v967
    %v975 = vmul.f32 1.0, %v974
    %v976 = vadd.f32 %v902, %v281
    %v977 = vadd.f32 %v907, %v286
    %v978 = vadd.f32 %v912, %v291
    %v979 = vadd.f32 %v917, %v296
    %v980 = vmul.f32 %v941, %v976
    %v981 = vmul.f32 %v943, %v977
    %v982 = vmul.f32 %v945, %v978
    %v983 = vmul.f32 %v947, %v979
    %v984 = vadd.f32 %v791, %v980
    %v985 = vadd.f32 %v792, %v981
    %v986 = vadd.f32 %v793, %v982
    %v987 = vadd.f32 %v794, %v983
    %v988 = vtanh.pop %v984
    %v989 = vtanh.pop %v985
    %v990 = vtanh.pop %v986
    %v991 = vtanh.pop %v987
    %v992 = vsub.f32 1.0, %v969
    %v993 = vsub.f32 1.0, %v971
    %v994 = vsub.f32 1.0, %v973
    %v995 = vsub.f32 1.0, %v975
    %v996 = vmul.f32 %v992, %v988
    %v997 = vmul.f32 %v993, %v989
    %v998 = vmul.f32 %v994, %v990
    %v999 = vmul.f32 %v995, %v991
    %v1000 = vmul.f32 %v969, %v778
    %v1001 = vmul.f32 %v971, %v779
    %v1002 = vmul.f32 %v973, %v780
    %v1003 = vmul.f32 %v975, %v781
    %v1004 = vadd.f32 %v996, %v1000
    %v1005 = vadd.f32 %v997, %v1001
    %v1006 = vadd.f32 %v998, %v1002
    %v1007 = vadd.f32 %v999, %v1003
    %s1008 = scalar_lea.vmem [#allocation2], 384
    %v1009 = vld [vmem:[%s1008] sm:$0xff]
    %v1010 = vld [vmem:[%s1008 + $0x8] sm:$0xff]
    %v1011 = vld [vmem:[%s1008 + $0x10] sm:$0xff]
    %v1012 = vld [vmem:[%s1008 + $0x18] sm:$0xff]
    %v1013 = vld [vmem:[%s1008 + $0x20] sm:$0xff]
    %v1014 = vld [vmem:[%s1008 + $0x28] sm:$0xff]
    %v1015 = vld [vmem:[%s1008 + $0x30] sm:$0xff]
    %v1016 = vld [vmem:[%s1008 + $0x38] sm:$0xff]
    %v1017 = vld [vmem:[%s1008 + $0x40] sm:$0xff]
    %v1018 = vld [vmem:[%s1008 + $0x48] sm:$0xff]
    %v1019 = vld [vmem:[%s1008 + $0x50] sm:$0xff]
    %v1020 = vld [vmem:[%s1008 + $0x58] sm:$0xff]
    %1021 = vmatprep.subr.mxu0 0.0
    %1022 = vmatpush1.msra.mxu0 %v1004
    %1023 = vmatprep.subr.mxu0 0.0
    %1024 = vmatpush1.msra.mxu0 %v1005
    %1025 = vmatprep.subr.mxu0 0.0
    %1026 = vmatpush1.msra.mxu0 %v1006
    %1027 = vmatprep.subr.mxu0 0.0
    %1028 = vmatpush1.msra.mxu0 %v1007
    %1029 = vmatprep.subr.mxu0 0.0
    %1030 = vmatpush1.msra.mxu0 0.0
    %1031 = vmatprep.subr.mxu0 0.0
    %1032 = vmatpush1.msra.mxu0 0.0
    %1033 = vmatprep.subr.mxu0 0.0
    %1034 = vmatpush1.msra.mxu0 0.0
    %1035 = vmatprep.subr.mxu0 0.0
    %1036 = vmatpush1.msra.mxu0 0.0
    %1037 = vmatprep.subr.mxu0 0.0
    %1038 = vmatpush1.msra.mxu0 0.0
    %1039 = vmatprep.subr.mxu0 0.0
    %1040 = vmatpush1.msra.mxu0 0.0
    %1041 = vmatprep.subr.mxu0 0.0
    %1042 = vmatpush1.msra.mxu0 0.0
    %1043 = vmatprep.subr.mxu0 0.0
    %1044 = vmatpush1.msra.mxu0 0.0
    %1045 = vmatprep.subr.mxu0 0.0
    %1046 = vmatpush1.msra.mxu0 0.0
    %1047 = vmatprep.subr.mxu0 0.0
    %1048 = vmatpush1.msra.mxu0 0.0
    %1049 = vmatprep.subr.mxu0 0.0
    %1050 = vmatpush1.msra.mxu0 0.0
    %1051 = vmatprep.subr.mxu0 0.0
    %1052 = vmatpush1.msra.mxu0 0.0
    %1053 = vmatprep.subr.mxu0 0.0
    %1054 = vmatpush1.msra.mxu0 0.0
    %1055 = vmatprep.subr.mxu0 0.0
    %1056 = vmatpush1.msra.mxu0 0.0
    %1057 = vmatprep.subr.mxu0 0.0
    %1058 = vmatpush1.msra.mxu0 0.0
    %1059 = vmatprep.subr.mxu0 0.0
    %1060 = vmatpush1.msra.mxu0 0.0
    %1061 = vmatprep.subr.mxu0 0.0
    %1062 = vmatpush1.msra.mxu0 0.0
    %1063 = vmatprep.subr.mxu0 0.0
    %1064 = vmatpush1.msra.mxu0 0.0
    %1065 = vmatprep.subr.mxu0 0.0
    %1066 = vmatpush1.msra.mxu0 0.0
    %1067 = vmatprep.subr.mxu0 0.0
    %1068 = vmatpush1.msra.mxu0 0.0
    %1069 = vmatprep.subr.mxu0 0.0
    %1070 = vmatpush1.msra.mxu0 0.0
    %1071 = vmatprep.subr.mxu0 0.0
    %1072 = vmatpush1.msra.mxu0 0.0
    %1073 = vmatprep.subr.mxu0 0.0
    %1074 = vmatpush1.msra.mxu0 0.0
    %1075 = vmatprep.subr.mxu0 0.0
    %1076 = vmatpush1.msra.mxu0 0.0
    %1077 = vmatprep.subr.mxu0 0.0
    %1078 = vmatpush1.msra.mxu0 0.0
    %1079 = vmatprep.subr.mxu0 0.0
    %1080 = vmatpush1.msra.mxu0 0.0
    %1081 = vmatprep.subr.mxu0 0.0
    %1082 = vmatpush1.msra.mxu0 0.0
    %1083 = vmatprep.subr.mxu0 0.0
    %1084 = vmatpush1.msra.mxu0 0.0
    %1085 = vmatprep.mubr.f32.mxu0 0.0
    %1086 = vmatmul.mubr.f32.gmra.mrb[0].mxu0 %v58
    %v1087 = vpop.f32.mrb[0].mxu0
    %v1088 = vadd.f32 0.0, %v1087
    %v1089 = vpop.f32.mrb[0].mxu0
    %1090 = vmatprep.mubr.f32.mxu0 0.0
    %1091 = vmatmul.mubr.f32.gmra.mrb[0].mxu0 %v61
    %v1092 = vpop.f32.mrb[0].mxu0
    %v1093 = vadd.f32 0.0, %v1092
    %v1094 = vpop.f32.mrb[0].mxu0
    %1095 = vmatprep.mubr.f32.mxu0 0.0
    %1096 = vmatmul.mubr.f32.gmra.mrb[0].mxu0 %v64
    %v1097 = vpop.f32.mrb[0].mxu0
    %v1098 = vadd.f32 0.0, %v1097
    %v1099 = vpop.f32.mrb[0].mxu0
    %1100 = vmatprep.mubr.f32.mxu0 0.0
    %1101 = vmatmul.mubr.f32.gmra.mrb[0].mxu0 %v67
    %v1102 = vpop.f32.mrb[0].mxu0
    %v1103 = vadd.f32 0.0, %v1102
    %v1104 = vpop.f32.mrb[0].mxu0
    %1105 = vmatprep.mubr.f32.mxu0 0.0
    %1106 = vmatmul.mubr.f32.gmra.mrb[0].mxu0 %v70
    %v1107 = vpop.f32.mrb[0].mxu0
    %v1108 = vadd.f32 0.0, %v1107
    %v1109 = vpop.f32.mrb[0].mxu0
    %1110 = vmatprep.mubr.f32.mxu0 0.0
    %1111 = vmatmul.mubr.f32.gmra.mrb[0].mxu0 %v73
    %v1112 = vpop.f32.mrb[0].mxu0
    %v1113 = vadd.f32 0.0, %v1112
    %v1114 = vpop.f32.mrb[0].mxu0
    %1115 = vmatprep.mubr.f32.mxu0 0.0
    %1116 = vmatmul.mubr.f32.gmra.mrb[0].mxu0 %v76
    %v1117 = vpop.f32.mrb[0].mxu0
    %v1118 = vadd.f32 0.0, %v1117
    %v1119 = vpop.f32.mrb[0].mxu0
    %1120 = vmatprep.mubr.f32.mxu0 0.0
    %1121 = vmatmul.mubr.f32.gmra.mrb[0].mxu0 %v79
    %v1122 = vpop.f32.mrb[0].mxu0
    %v1123 = vadd.f32 0.0, %v1122
    %v1124 = vpop.f32.mrb[0].mxu0
    %1125 = vmatprep.mubr.f32.mxu0 0.0
    %1126 = vmatmul.mubr.f32.gmra.mrb[0].mxu0 %v82
    %v1127 = vpop.f32.mrb[0].mxu0
    %v1128 = vadd.f32 0.0, %v1127
    %v1129 = vpop.f32.mrb[0].mxu0
    %1130 = vmatprep.mubr.f32.mxu0 0.0
    %1131 = vmatmul.mubr.f32.gmra.mrb[0].mxu0 %v85
    %v1132 = vpop.f32.mrb[0].mxu0
    %v1133 = vadd.f32 0.0, %v1132
    %v1134 = vpop.f32.mrb[0].mxu0
    %1135 = vmatprep.mubr.f32.mxu0 0.0
    %1136 = vmatmul.mubr.f32.gmra.mrb[0].mxu0 %v88
    %v1137 = vpop.f32.mrb[0].mxu0
    %v1138 = vadd.f32 0.0, %v1137
    %v1139 = vpop.f32.mrb[0].mxu0
    %1140 = vmatprep.mubr.f32.mxu0 0.0
    %1141 = vmatmul.mubr.f32.gmra.mrb[0].mxu0 %v91
    %v1142 = vpop.f32.mrb[0].mxu0
    %v1143 = vadd.f32 0.0, %v1142
    %v1144 = vpop.f32.mrb[0].mxu0
    %1145 = vdwg.mxu0
    %v1146 = vadd.f32 %v1009, %v1088
    %v1147 = vadd.f32 %v1010, %v1093
    %v1148 = vadd.f32 %v1011, %v1098
    %v1149 = vadd.f32 %v1012, %v1103
    %v1150 = vxor.u32 %v1146, 2147483648
    %v1151 = vxor.u32 %v1147, 2147483648
    %v1152 = vxor.u32 %v1148, 2147483648
    %v1153 = vxor.u32 %v1149, 2147483648
    %v1154 = vmul.f32 %v1150, 1.442695
    %v1155 = vpow.pop %v1154
    %v1156 = vmul.f32 %v1151, 1.442695
    %v1157 = vpow.pop %v1156
    %v1158 = vmul.f32 %v1152, 1.442695
    %v1159 = vpow.pop %v1158
    %v1160 = vmul.f32 %v1153, 1.442695
    %v1161 = vpow.pop %v1160
    %v1162 = vadd.f32 %v1155, 1.0
    %v1163 = vadd.f32 %v1157, 1.0
    %v1164 = vadd.f32 %v1159, 1.0
    %v1165 = vadd.f32 %v1161, 1.0
    %v1166 = vrcp.pop %v1162
    %v1167 = vmul.f32 1.0, %v1166
    %v1168 = vrcp.pop %v1163
    %v1169 = vmul.f32 1.0, %v1168
    %v1170 = vrcp.pop %v1164
    %v1171 = vmul.f32 1.0, %v1170
    %v1172 = vrcp.pop %v1165
    %v1173 = vmul.f32 1.0, %v1172
    %v1174 = vadd.f32 %v1013, %v1108
    %v1175 = vadd.f32 %v1014, %v1113
    %v1176 = vadd.f32 %v1015, %v1118
    %v1177 = vadd.f32 %v1016, %v1123
    %v1178 = vxor.u32 %v1174, 2147483648
    %v1179 = vxor.u32 %v1175, 2147483648
    %v1180 = vxor.u32 %v1176, 2147483648
    %v1181 = vxor.u32 %v1177, 2147483648
    %v1182 = vmul.f32 %v1178, 1.442695
    %v1183 = vpow.pop %v1182
    %v1184 = vmul.f32 %v1179, 1.442695
    %v1185 = vpow.pop %v1184
    %v1186 = vmul.f32 %v1180, 1.442695
    %v1187 = vpow.pop %v1186
    %v1188 = vmul.f32 %v1181, 1.442695
    %v1189 = vpow.pop %v1188
    %v1190 = vadd.f32 %v1183, 1.0
    %v1191 = vadd.f32 %v1185, 1.0
    %v1192 = vadd.f32 %v1187, 1.0
    %v1193 = vadd.f32 %v1189, 1.0
    %v1194 = vrcp.pop %v1190
    %v1195 = vmul.f32 1.0, %v1194
    %v1196 = vrcp.pop %v1191
    %v1197 = vmul.f32 1.0, %v1196
    %v1198 = vrcp.pop %v1192
    %v1199 = vmul.f32 1.0, %v1198
    %v1200 = vrcp.pop %v1193
    %v1201 = vmul.f32 1.0, %v1200
    %v1202 = vadd.f32 %v1128, %v281
    %v1203 = vadd.f32 %v1133, %v286
    %v1204 = vadd.f32 %v1138, %v291
    %v1205 = vadd.f32 %v1143, %v296
    %v1206 = vmul.f32 %v1167, %v1202
    %v1207 = vmul.f32 %v1169, %v1203
    %v1208 = vmul.f32 %v1171, %v1204
    %v1209 = vmul.f32 %v1173, %v1205
    %v1210 = vadd.f32 %v1017, %v1206
    %v1211 = vadd.f32 %v1018, %v1207
    %v1212 = vadd.f32 %v1019, %v1208
    %v1213 = vadd.f32 %v1020, %v1209
    %v1214 = vtanh.pop %v1210
    %v1215 = vtanh.pop %v1211
    %v1216 = vtanh.pop %v1212
    %v1217 = vtanh.pop %v1213
    %v1218 = vsub.f32 1.0, %v1195
    %v1219 = vsub.f32 1.0, %v1197
    %v1220 = vsub.f32 1.0, %v1199
    %v1221 = vsub.f32 1.0, %v1201
    %v1222 = vmul.f32 %v1218, %v1214
    %v1223 = vmul.f32 %v1219, %v1215
    %v1224 = vmul.f32 %v1220, %v1216
    %v1225 = vmul.f32 %v1221, %v1217
    %v1226 = vmul.f32 %v1195, %v1004
    %v1227 = vmul.f32 %v1197, %v1005
    %v1228 = vmul.f32 %v1199, %v1006
    %v1229 = vmul.f32 %v1201, %v1007
    %v1230 = vadd.f32 %v1222, %v1226
    %v1231 = vadd.f32 %v1223, %v1227
    %v1232 = vadd.f32 %v1224, %v1228
    %v1233 = vadd.f32 %v1225, %v1229
    %s1234 = scalar_lea.vmem [#allocation2], 480
    %v1235 = vld [vmem:[%s1234] sm:$0xff]
    %v1236 = vld [vmem:[%s1234 + $0x8] sm:$0xff]
    %v1237 = vld [vmem:[%s1234 + $0x10] sm:$0xff]
    %v1238 = vld [vmem:[%s1234 + $0x18] sm:$0xff]
    %v1239 = vld [vmem:[%s1234 + $0x20] sm:$0xff]
    %v1240 = vld [vmem:[%s1234 + $0x28] sm:$0xff]
    %v1241 = vld [vmem:[%s1234 + $0x30] sm:$0xff]
    %v1242 = vld [vmem:[%s1234 + $0x38] sm:$0xff]
    %v1243 = vld [vmem:[%s1234 + $0x40] sm:$0xff]
    %v1244 = vld [vmem:[%s1234 + $0x48] sm:$0xff]
    %v1245 = vld [vmem:[%s1234 + $0x50] sm:$0xff]
    %v1246 = vld [vmem:[%s1234 + $0x58] sm:$0xff]
    %1247 = vmatprep.subr.mxu0 0.0
    %1248 = vmatpush1.msra.mxu0 %v1230
    %1249 = vmatprep.subr.mxu0 0.0
    %1250 = vmatpush1.msra.mxu0 %v1231
    %1251 = vmatprep.subr.mxu0 0.0
    %1252 = vmatpush1.msra.mxu0 %v1232
    %1253 = vmatprep.subr.mxu0 0.0
    %1254 = vmatpush1.msra.mxu0 %v1233
    %1255 = vmatprep.subr.mxu0 0.0
    %1256 = vmatpush1.msra.mxu0 0.0
    %1257 = vmatprep.subr.mxu0 0.0
    %1258 = vmatpush1.msra.mxu0 0.0
    %1259 = vmatprep.subr.mxu0 0.0
    %1260 = vmatpush1.msra.mxu0 0.0
    %1261 = vmatprep.subr.mxu0 0.0
    %1262 = vmatpush1.msra.mxu0 0.0
    %1263 = vmatprep.subr.mxu0 0.0
    %1264 = vmatpush1.msra.mxu0 0.0
    %1265 = vmatprep.subr.mxu0 0.0
    %1266 = vmatpush1.msra.mxu0 0.0
    %1267 = vmatprep.subr.mxu0 0.0
    %1268 = vmatpush1.msra.mxu0 0.0
    %1269 = vmatprep.subr.mxu0 0.0
    %1270 = vmatpush1.msra.mxu0 0.0
    %1271 = vmatprep.subr.mxu0 0.0
    %1272 = vmatpush1.msra.mxu0 0.0
    %1273 = vmatprep.subr.mxu0 0.0
    %1274 = vmatpush1.msra.mxu0 0.0
    %1275 = vmatprep.subr.mxu0 0.0
    %1276 = vmatpush1.msra.mxu0 0.0
    %1277 = vmatprep.subr.mxu0 0.0
    %1278 = vmatpush1.msra.mxu0 0.0
    %1279 = vmatprep.subr.mxu0 0.0
    %1280 = vmatpush1.msra.mxu0 0.0
    %1281 = vmatprep.subr.mxu0 0.0
    %1282 = vmatpush1.msra.mxu0 0.0
    %1283 = vmatprep.subr.mxu0 0.0
    %1284 = vmatpush1.msra.mxu0 0.0
    %1285 = vmatprep.subr.mxu0 0.0
    %1286 = vmatpush1.msra.mxu0 0.0
    %1287 = vmatprep.subr.mxu0 0.0
    %1288 = vmatpush1.msra.mxu0 0.0
    %1289 = vmatprep.subr.mxu0 0.0
    %1290 = vmatpush1.msra.mxu0 0.0
    %1291 = vmatprep.subr.mxu0 0.0
    %1292 = vmatpush1.msra.mxu0 0.0
    %1293 = vmatprep.subr.mxu0 0.0
    %1294 = vmatpush1.msra.mxu0 0.0
    %1295 = vmatprep.subr.mxu0 0.0
    %1296 = vmatpush1.msra.mxu0 0.0
    %1297 = vmatprep.subr.mxu0 0.0
    %1298 = vmatpush1.msra.mxu0 0.0
    %1299 = vmatprep.subr.mxu0 0.0
    %1300 = vmatpush1.msra.mxu0 0.0
    %1301 = vmatprep.subr.mxu0 0.0
    %1302 = vmatpush1.msra.mxu0 0.0
    %1303 = vmatprep.subr.mxu0 0.0
    %1304 = vmatpush1.msra.mxu0 0.0
    %1305 = vmatprep.subr.mxu0 0.0
    %1306 = vmatpush1.msra.mxu0 0.0
    %1307 = vmatprep.subr.mxu0 0.0
    %1308 = vmatpush1.msra.mxu0 0.0
    %1309 = vmatprep.subr.mxu0 0.0
    %1310 = vmatpush1.msra.mxu0 0.0
    %1311 = vmatprep.mubr.f32.mxu0 0.0
    %1312 = vmatmul.mubr.f32.gmra.mrb[0].mxu0 %v58
    %v1313 = vpop.f32.mrb[0].mxu0
    %v1314 = vadd.f32 0.0, %v1313
    %v1315 = vpop.f32.mrb[0].mxu0
    %1316 = vmatprep.mubr.f32.mxu0 0.0
    %1317 = vmatmul.mubr.f32.gmra.mrb[0].mxu0 %v61
    %v1318 = vpop.f32.mrb[0].mxu0
    %v1319 = vadd.f32 0.0, %v1318
    %v1320 = vpop.f32.mrb[0].mxu0
    %1321 = vmatprep.mubr.f32.mxu0 0.0
    %1322 = vmatmul.mubr.f32.gmra.mrb[0].mxu0 %v64
    %v1323 = vpop.f32.mrb[0].mxu0
    %v1324 = vadd.f32 0.0, %v1323
    %v1325 = vpop.f32.mrb[0].mxu0
    %1326 = vmatprep.mubr.f32.mxu0 0.0
    %1327 = vmatmul.mubr.f32.gmra.mrb[0].mxu0 %v67
    %v1328 = vpop.f32.mrb[0].mxu0
    %v1329 = vadd.f32 0.0, %v1328
    %v1330 = vpop.f32.mrb[0].mxu0
    %1331 = vmatprep.mubr.f32.mxu0 0.0
    %1332 = vmatmul.mubr.f32.gmra.mrb[0].mxu0 %v70
    %v1333 = vpop.f32.mrb[0].mxu0
    %v1334 = vadd.f32 0.0, %v1333
    %v1335 = vpop.f32.mrb[0].mxu0
    %1336 = vmatprep.mubr.f32.mxu0 0.0
    %1337 = vmatmul.mubr.f32.gmra.mrb[0].mxu0 %v73
    %v1338 = vpop.f32.mrb[0].mxu0
    %v1339 = vadd.f32 0.0, %v1338
    %v1340 = vpop.f32.mrb[0].mxu0
    %1341 = vmatprep.mubr.f32.mxu0 0.0
    %1342 = vmatmul.mubr.f32.gmra.mrb[0].mxu0 %v76
    %v1343 = vpop.f32.mrb[0].mxu0
    %v1344 = vadd.f32 0.0, %v1343
    %v1345 = vpop.f32.mrb[0].mxu0
    %1346 = vmatprep.mubr.f32.mxu0 0.0
    %1347 = vmatmul.mubr.f32.gmra.mrb[0].mxu0 %v79
    %v1348 = vpop.f32.mrb[0].mxu0
    %v1349 = vadd.f32 0.0, %v1348
    %v1350 = vpop.f32.mrb[0].mxu0
    %1351 = vmatprep.mubr.f32.mxu0 0.0
    %1352 = vmatmul.mubr.f32.gmra.mrb[0].mxu0 %v82
    %v1353 = vpop.f32.mrb[0].mxu0
    %v1354 = vadd.f32 0.0, %v1353
    %v1355 = vpop.f32.mrb[0].mxu0
    %1356 = vmatprep.mubr.f32.mxu0 0.0
    %1357 = vmatmul.mubr.f32.gmra.mrb[0].mxu0 %v85
    %v1358 = vpop.f32.mrb[0].mxu0
    %v1359 = vadd.f32 0.0, %v1358
    %v1360 = vpop.f32.mrb[0].mxu0
    %1361 = vmatprep.mubr.f32.mxu0 0.0
    %1362 = vmatmul.mubr.f32.gmra.mrb[0].mxu0 %v88
    %v1363 = vpop.f32.mrb[0].mxu0
    %v1364 = vadd.f32 0.0, %v1363
    %v1365 = vpop.f32.mrb[0].mxu0
    %1366 = vmatprep.mubr.f32.mxu0 0.0
    %1367 = vmatmul.mubr.f32.gmra.mrb[0].mxu0 %v91
    %v1368 = vpop.f32.mrb[0].mxu0
    %v1369 = vadd.f32 0.0, %v1368
    %v1370 = vpop.f32.mrb[0].mxu0
    %1371 = vdwg.mxu0
    %v1372 = vadd.f32 %v1235, %v1314
    %v1373 = vadd.f32 %v1236, %v1319
    %v1374 = vadd.f32 %v1237, %v1324
    %v1375 = vadd.f32 %v1238, %v1329
    %v1376 = vxor.u32 %v1372, 2147483648
    %v1377 = vxor.u32 %v1373, 2147483648
    %v1378 = vxor.u32 %v1374, 2147483648
    %v1379 = vxor.u32 %v1375, 2147483648
    %v1380 = vmul.f32 %v1376, 1.442695
    %v1381 = vpow.pop %v1380
    %v1382 = vmul.f32 %v1377, 1.442695
    %v1383 = vpow.pop %v1382
    %v1384 = vmul.f32 %v1378, 1.442695
    %v1385 = vpow.pop %v1384
    %v1386 = vmul.f32 %v1379, 1.442695
    %v1387 = vpow.pop %v1386
    %v1388 = vadd.f32 %v1381, 1.0
    %v1389 = vadd.f32 %v1383, 1.0
    %v1390 = vadd.f32 %v1385, 1.0
    %v1391 = vadd.f32 %v1387, 1.0
    %v1392 = vrcp.pop %v1388
    %v1393 = vmul.f32 1.0, %v1392
    %v1394 = vrcp.pop %v1389
    %v1395 = vmul.f32 1.0, %v1394
    %v1396 = vrcp.pop %v1390
    %v1397 = vmul.f32 1.0, %v1396
    %v1398 = vrcp.pop %v1391
    %v1399 = vmul.f32 1.0, %v1398
    %v1400 = vadd.f32 %v1239, %v1334
    %v1401 = vadd.f32 %v1240, %v1339
    %v1402 = vadd.f32 %v1241, %v1344
    %v1403 = vadd.f32 %v1242, %v1349
    %v1404 = vxor.u32 %v1400, 2147483648
    %v1405 = vxor.u32 %v1401, 2147483648
    %v1406 = vxor.u32 %v1402, 2147483648
    %v1407 = vxor.u32 %v1403, 2147483648
    %v1408 = vmul.f32 %v1404, 1.442695
    %v1409 = vpow.pop %v1408
    %v1410 = vmul.f32 %v1405, 1.442695
    %v1411 = vpow.pop %v1410
    %v1412 = vmul.f32 %v1406, 1.442695
    %v1413 = vpow.pop %v1412
    %v1414 = vmul.f32 %v1407, 1.442695
    %v1415 = vpow.pop %v1414
    %v1416 = vadd.f32 %v1409, 1.0
    %v1417 = vadd.f32 %v1411, 1.0
    %v1418 = vadd.f32 %v1413, 1.0
    %v1419 = vadd.f32 %v1415, 1.0
    %v1420 = vrcp.pop %v1416
    %v1421 = vmul.f32 1.0, %v1420
    %v1422 = vrcp.pop %v1417
    %v1423 = vmul.f32 1.0, %v1422
    %v1424 = vrcp.pop %v1418
    %v1425 = vmul.f32 1.0, %v1424
    %v1426 = vrcp.pop %v1419
    %v1427 = vmul.f32 1.0, %v1426
    %v1428 = vadd.f32 %v1354, %v281
    %v1429 = vadd.f32 %v1359, %v286
    %v1430 = vadd.f32 %v1364, %v291
    %v1431 = vadd.f32 %v1369, %v296
    %v1432 = vmul.f32 %v1393, %v1428
    %v1433 = vmul.f32 %v1395, %v1429
    %v1434 = vmul.f32 %v1397, %v1430
    %v1435 = vmul.f32 %v1399, %v1431
    %v1436 = vadd.f32 %v1243, %v1432
    %v1437 = vadd.f32 %v1244, %v1433
    %v1438 = vadd.f32 %v1245, %v1434
    %v1439 = vadd.f32 %v1246, %v1435
    %v1440 = vtanh.pop %v1436
    %v1441 = vtanh.pop %v1437
    %v1442 = vtanh.pop %v1438
    %v1443 = vtanh.pop %v1439
    %v1444 = vsub.f32 1.0, %v1421
    %v1445 = vsub.f32 1.0, %v1423
    %v1446 = vsub.f32 1.0, %v1425
    %v1447 = vsub.f32 1.0, %v1427
    %v1448 = vmul.f32 %v1444, %v1440
    %v1449 = vmul.f32 %v1445, %v1441
    %v1450 = vmul.f32 %v1446, %v1442
    %v1451 = vmul.f32 %v1447, %v1443
    %v1452 = vmul.f32 %v1421, %v1230
    %v1453 = vmul.f32 %v1423, %v1231
    %v1454 = vmul.f32 %v1425, %v1232
    %v1455 = vmul.f32 %v1427, %v1233
    %v1456 = vadd.f32 %v1448, %v1452
    %v1457 = vadd.f32 %v1449, %v1453
    %v1458 = vadd.f32 %v1450, %v1454
    %v1459 = vadd.f32 %v1451, %v1455
    %v1460 = vld [vmem:[%s3] sm:$0xf]
    %v1462 = vsel %vm56, %v1460, 0
    %1464 = vmatprep.subr.mxu0 0.0
    %1465 = vmatpush1.msra.mxu0 %v1456
    %1466 = vmatprep.subr.mxu0 0.0
    %1467 = vmatpush1.msra.mxu0 %v1457
    %1468 = vmatprep.subr.mxu0 0.0
    %1469 = vmatpush1.msra.mxu0 %v1458
    %1470 = vmatprep.subr.mxu0 0.0
    %1471 = vmatpush1.msra.mxu0 %v1459
    %1472 = vmatprep.subr.mxu0 0.0
    %1473 = vmatpush1.msra.mxu0 0.0
    %1474 = vmatprep.subr.mxu0 0.0
    %1475 = vmatpush1.msra.mxu0 0.0
    %1476 = vmatprep.subr.mxu0 0.0
    %1477 = vmatpush1.msra.mxu0 0.0
    %1478 = vmatprep.subr.mxu0 0.0
    %1479 = vmatpush1.msra.mxu0 0.0
    %1480 = vmatprep.subr.mxu0 0.0
    %1481 = vmatpush1.msra.mxu0 0.0
    %1482 = vmatprep.subr.mxu0 0.0
    %1483 = vmatpush1.msra.mxu0 0.0
    %1484 = vmatprep.subr.mxu0 0.0
    %1485 = vmatpush1.msra.mxu0 0.0
    %1486 = vmatprep.subr.mxu0 0.0
    %1487 = vmatpush1.msra.mxu0 0.0
    %1488 = vmatprep.subr.mxu0 0.0
    %1489 = vmatpush1.msra.mxu0 0.0
    %1490 = vmatprep.subr.mxu0 0.0
    %1491 = vmatpush1.msra.mxu0 0.0
    %1492 = vmatprep.subr.mxu0 0.0
    %1493 = vmatpush1.msra.mxu0 0.0
    %1494 = vmatprep.subr.mxu0 0.0
    %1495 = vmatpush1.msra.mxu0 0.0
    %1496 = vmatprep.subr.mxu0 0.0
    %1497 = vmatpush1.msra.mxu0 0.0
    %1498 = vmatprep.subr.mxu0 0.0
    %1499 = vmatpush1.msra.mxu0 0.0
    %1500 = vmatprep.subr.mxu0 0.0
    %1501 = vmatpush1.msra.mxu0 0.0
    %1502 = vmatprep.subr.mxu0 0.0
    %1503 = vmatpush1.msra.mxu0 0.0
    %1504 = vmatprep.subr.mxu0 0.0
    %1505 = vmatpush1.msra.mxu0 0.0
    %1506 = vmatprep.subr.mxu0 0.0
    %1507 = vmatpush1.msra.mxu0 0.0
    %1508 = vmatprep.subr.mxu0 0.0
    %1509 = vmatpush1.msra.mxu0 0.0
    %1510 = vmatprep.subr.mxu0 0.0
    %1511 = vmatpush1.msra.mxu0 0.0
    %1512 = vmatprep.subr.mxu0 0.0
    %1513 = vmatpush1.msra.mxu0 0.0
    %1514 = vmatprep.subr.mxu0 0.0
    %1515 = vmatpush1.msra.mxu0 0.0
    %1516 = vmatprep.subr.mxu0 0.0
    %1517 = vmatpush1.msra.mxu0 0.0
    %1518 = vmatprep.subr.mxu0 0.0
    %1519 = vmatpush1.msra.mxu0 0.0
    %1520 = vmatprep.subr.mxu0 0.0
    %1521 = vmatpush1.msra.mxu0 0.0
    %1522 = vmatprep.subr.mxu0 0.0
    %1523 = vmatpush1.msra.mxu0 0.0
    %1524 = vmatprep.subr.mxu0 0.0
    %1525 = vmatpush1.msra.mxu0 0.0
    %1526 = vmatprep.subr.mxu0 0.0
    %1527 = vmatpush1.msra.mxu0 0.0
    %1528 = vmatprep.mubr.f32.mxu0 0.0
    %1529 = vmatmul.mubr.f32.gmra.mrb[0].mxu0 %v1462
    %v1530 = vpop.f32.mrb[0].mxu0
    %v1531 = vadd.f32 0.0, %v1530
    %v1532 = vpop.f32.mrb[0].mxu0
    %1533 = vdwg.mxu0
    %1534 = vst [vmem:[#allocation5] sm:$0xf] %v1531
    // Predicated region
    $region22: #{tpu_custom_call.1} parent=1 // pred_check
      _
    $region23: #{tpu_custom_call.1} parent=1 // pred_check_branch
      %1536 = sbr.rel (0) target = $region25
    $region24: #{tpu_custom_call.1} parent=1 // pred_region
      %s1538 = ssub.s32 64, 64
      %1539 = vsyncadd [#allocation4], %s1538
      %s1541 = sshll.u32 [#allocation5], 4
      %s1542 = int_to_ptr.vmem [resolvable:$true] %s1541
      %1544 = dma.vmem_to_hbm [thread:$0]  %s1542, 64, %s4, [#allocation4]
    $region25: #{tpu_custom_call.1} parent=1 // pred_fallthru
      _
    // Predicated region
    $region26: #{tpu_custom_call.1} parent=1 // pred_check
      _
    $region27: #{tpu_custom_call.1} parent=1 // pred_check_branch
      %1546 = sbr.rel (0) target = $region29
    $region28: #{tpu_custom_call.1} parent=1 // pred_region
      %1547 = dma.done [#allocation4], 64
    $region29: #{tpu_custom_call.1} parent=1 // pred_fallthru
      _
    %1548 = vsyncpa [#allocation3], 1
    %1549 = vsyncpa [#allocation4], 1

</llo_original>
